<compile_context>
chip_gen: v5e
topology: v5e:2x2
jax: 0.10.0
libtpu: 0.0.40
codegen_flags: <defaults>
</compile_context>

<pallas_src>
import jax
import jax.numpy as jnp
from jax import lax
from jax.experimental import pallas as pl
from jax.experimental.pallas import tpu as pltpu

# Problem sizes from the PyTorch module: Conv2d(128, 32, kernel_size=3, stride=1, padding=1, bias=False)
CIN, COUT = 128, 32
KH, KW = 3, 3
H, W = 14, 14
HW = H * W                      # 196 flat spatial positions
TAPS = KH * KW                  # 9
PAD_L = 128                     # left zero margin in the padded scratch (lane-tile aligned store)
NP = 384                        # scratch width: PAD_L + HW + right margin, rounded to 3 lane tiles


def conv3x3_kernel(x_ref, w_ref, o_ref, xp_ref, y_ref):
    # x_ref : (CIN, HW)        = (128, 196) input, channel-major flat spatial (free NCHW reshape)
    # w_ref : (TAPS*COUT, CIN) = (288, 128) weights, rows grouped by tap t = kh*KW + kw
    # o_ref : (COUT, HW)       = (32, 196)  output (free reshape back to NCHW)
    # xp_ref: (CIN, NP)        VMEM scratch, zero-padded copy of the input
    # y_ref : (TAPS*COUT, NP)  VMEM scratch, per-tap channel contractions

    # 1) zero-pad the input inside VMEM (kills the wrapper-side HBM jnp.pad).
    xp_ref[...] = jnp.zeros_like(xp_ref)
    xp_ref[:, PAD_L:PAD_L + HW] = x_ref[...]

    # 2) single MXU matmul: y[t*COUT + co, c] = sum_ci w[co, ci, kh, kw] * xp[ci, c]
    y_ref[...] = lax.dot_general(
        w_ref[...], xp_ref[...],
        dimension_numbers=(((1,), (0,)), ((), ())),
        preferred_element_type=jnp.float32,
    )

    # Lane masks for the flat H*W index: positions in the first / last image column.
    # Built from equality compares only (no integer div/mod needed on the VPU).
    p_idx = lax.broadcasted_iota(jnp.int32, (COUT, HW), 1)
    first_col = jnp.zeros((COUT, HW), dtype=jnp.bool_)
    last_col = jnp.zeros((COUT, HW), dtype=jnp.bool_)
    for r in range(H):
        first_col = first_col | (p_idx == r * W)            # w == 0
        last_col = last_col | (p_idx == r * W + (W - 1))    # w == W-1
    not_first_col = jnp.logical_not(first_col)
    not_last_col = jnp.logical_not(last_col)

    # 3) shift-and-accumulate the 9 tap results on the SMALL (32, 196) arrays.
    #    out[co, p] = sum_t y[t*COUT + co, PAD_L + p + d_t],  d_t = (kh-1)*W + (kw-1).
    #    The zero margins of xp make out-of-range rows contribute exactly 0; the column masks
    #    remove the wrap-around between adjacent image rows of the flattened index.
    acc = jnp.zeros((COUT, HW), dtype=jnp.float32)
    for kh in range(KH):
        for kw in range(KW):
            t = kh * KW + kw
            d = (kh - 1) * W + (kw - 1)
            start = PAD_L + d                                 # in [113, 143], window fits in NP
            tap = y_ref[t * COUT:(t + 1) * COUT, start:start + HW]   # (COUT, HW)
            if kw == 0:       # reads w-1: invalid in the first column
                tap = jnp.where(not_first_col, tap, 0.0)
            elif kw == 2:     # reads w+1: invalid in the last column
                tap = jnp.where(not_last_col, tap, 0.0)
            acc = acc + tap

    o_ref[...] = acc.astype(o_ref.dtype)


def conv2d_3x3_pallas(x_nchw, w_oihw):
    """NCHW (1, 128, 14, 14) x OIHW (32, 128, 3, 3) -> NCHW (1, 32, 14, 14), stride 1, pad 1."""
    assert x_nchw.shape == (1, CIN, H, W)
    assert w_oihw.shape == (COUT, CIN, KH, KW)

    # Free reshape of the native NCHW layout: no transpose, no pad in HBM.
    x_cm = x_nchw.reshape(CIN, HW)                                      # (128, 196)
    # Weights: (COUT, CIN, KH, KW) -> (KH, KW, COUT, CIN) -> (TAPS*COUT, CIN). One tiny op.
    w_flat = jnp.transpose(w_oihw, (2, 3, 0, 1)).reshape(TAPS * COUT, CIN)

    out_flat = pl.pallas_call(
        conv3x3_kernel,
        out_shape=jax.ShapeDtypeStruct((COUT, HW), jnp.float32),
        in_specs=[
            pl.BlockSpec((CIN, HW), lambda: (0, 0)),
            pl.BlockSpec((TAPS * COUT, CIN), lambda: (0, 0)),
        ],
        out_specs=pl.BlockSpec((COUT, HW), lambda: (0, 0)),
        scratch_shapes=[
            pltpu.VMEM((CIN, NP), jnp.float32),          # zero-padded input
            pltpu.VMEM((TAPS * COUT, NP), jnp.float32),  # per-tap contractions
        ],
    )(x_cm, w_flat)

    # (COUT, HW) -> (1, COUT, H, W): free reshape (lane-dense result already in channel-major order).
    # TODO(synk): generalize to batch > 1 by folding N into the flat spatial (lane) dimension.
    return out_flat.reshape(1, COUT, H, W)


if __name__ == "__main__":
    key = jax.random.PRNGKey(0)
    kx, kwt = jax.random.split(key)
    x = jax.random.normal(kx, (1, CIN, H, W), dtype=jnp.float32)            # x244
    w = jax.random.normal(kwt, (COUT, CIN, KH, KW), dtype=jnp.float32) * 0.05

    out = conv2d_3x3_pallas(x, w)
    out = jax.block_until_ready(out)

    # Reference: XLA conv with the same semantics as torch Conv2d (NCHW/OIHW, stride 1, pad 1).
    ref = lax.conv_general_dilated(
        x, w, window_strides=(1, 1), padding=((1, 1), (1, 1)),
        dimension_numbers=("NCHW", "OIHW", "NCHW"),
    )
    assert out.shape == (1, COUT, H, W)
    assert jnp.allclose(out, ref, atol=1e-4, rtol=1e-4), "mismatch vs XLA conv reference"

    print("KERNEL_OK")
</pallas_src>

<mosaic_0001>
module attributes {stable_mosaic.version = 11 : i64} {
  func.func @conv3x3_kernel(%arg0: memref<128x196xf32, #tpu.memory_space<vmem>>, %arg1: memref<288x128xf32, #tpu.memory_space<vmem>>, %arg2: memref<32x196xf32, #tpu.memory_space<vmem>>, %arg3: memref<128x384xf32, #tpu.memory_space<vmem>>, %arg4: memref<288x384xf32, #tpu.memory_space<vmem>>) attributes {dimension_semantics = [], scalar_prefetch = 0 : i64, scratch_operands = 2 : i64, tpu.core_type = #tpu.core_type<tc>} {
    %cst = arith.constant 0.000000e+00 : f32
    %0 = vector.broadcast %cst : f32 to vector<128x384xf32>
    %c0 = arith.constant 0 : index
    %c0_0 = arith.constant 0 : index
    %1 = vector.load %arg3[%c0, %c0_0] : memref<128x384xf32, #tpu.memory_space<vmem>>, vector<128x384xf32>
    tpu.vector_store %arg3[%c0, %c0_0], %0 {strides = array<i32>} : memref<128x384xf32, #tpu.memory_space<vmem>>, vector<128x384xf32>,
    %c0_1 = arith.constant 0 : index
    %c0_2 = arith.constant 0 : index
    %2 = vector.load %arg0[%c0_1, %c0_2] : memref<128x196xf32, #tpu.memory_space<vmem>>, vector<128x196xf32>
    %c0_3 = arith.constant 0 : index
    %c128 = arith.constant 128 : index
    %3 = vector.load %arg3[%c0_3, %c128] : memref<128x384xf32, #tpu.memory_space<vmem>>, vector<128x196xf32>
    tpu.vector_store %arg3[%c0_3, %c128], %2 {strides = array<i32>} : memref<128x384xf32, #tpu.memory_space<vmem>>, vector<128x196xf32>,
    %c0_4 = arith.constant 0 : index
    %c0_5 = arith.constant 0 : index
    %4 = vector.load %arg1[%c0_4, %c0_5] : memref<288x128xf32, #tpu.memory_space<vmem>>, vector<288x128xf32>
    %c0_6 = arith.constant 0 : index
    %c0_7 = arith.constant 0 : index
    %5 = vector.load %arg3[%c0_6, %c0_7] : memref<128x384xf32, #tpu.memory_space<vmem>>, vector<128x384xf32>
    %cst_8 = arith.constant dense<0.000000e+00> : vector<288x384xf32>
    %6 = tpu.matmul %4, %5, %cst_8 {dimension_numbers = #tpu.dot_dimension_numbers<[1], [0], [0], [1], [0, 0, 1, 1], [], []>} : vector<288x128xf32>, vector<128x384xf32>, vector<288x384xf32> -> vector<288x384xf32>
    %c0_9 = arith.constant 0 : index
    %c0_10 = arith.constant 0 : index
    %7 = vector.load %arg4[%c0_9, %c0_10] : memref<288x384xf32, #tpu.memory_space<vmem>>, vector<288x384xf32>
    tpu.vector_store %arg4[%c0_9, %c0_10], %6 {strides = array<i32>} : memref<288x384xf32, #tpu.memory_space<vmem>>, vector<288x384xf32>,
    %8 = tpu.iota {dimensions = array<i32: 1>} : vector<32x196xi32>
    %false = arith.constant false
    %9 = vector.broadcast %false : i1 to vector<32x196xi1>
    %false_11 = arith.constant false
    %10 = vector.broadcast %false_11 : i1 to vector<32x196xi1>
    %c0_i32 = arith.constant 0 : i32
    %11 = vector.broadcast %c0_i32 : i32 to vector<32x196xi32>
    %12 = arith.cmpi eq, %8, %11 : vector<32x196xi32>
    %13 = arith.ori %9, %12 : vector<32x196xi1>
    %c13_i32 = arith.constant 13 : i32
    %14 = vector.broadcast %c13_i32 : i32 to vector<32x196xi32>
    %15 = arith.cmpi eq, %8, %14 : vector<32x196xi32>
    %16 = arith.ori %10, %15 : vector<32x196xi1>
    %c14_i32 = arith.constant 14 : i32
    %17 = vector.broadcast %c14_i32 : i32 to vector<32x196xi32>
    %18 = arith.cmpi eq, %8, %17 : vector<32x196xi32>
    %19 = arith.ori %13, %18 : vector<32x196xi1>
    %c27_i32 = arith.constant 27 : i32
    %20 = vector.broadcast %c27_i32 : i32 to vector<32x196xi32>
    %21 = arith.cmpi eq, %8, %20 : vector<32x196xi32>
    %22 = arith.ori %16, %21 : vector<32x196xi1>
    %c28_i32 = arith.constant 28 : i32
    %23 = vector.broadcast %c28_i32 : i32 to vector<32x196xi32>
    %24 = arith.cmpi eq, %8, %23 : vector<32x196xi32>
    %25 = arith.ori %19, %24 : vector<32x196xi1>
    %c41_i32 = arith.constant 41 : i32
    %26 = vector.broadcast %c41_i32 : i32 to vector<32x196xi32>
    %27 = arith.cmpi eq, %8, %26 : vector<32x196xi32>
    %28 = arith.ori %22, %27 : vector<32x196xi1>
    %c42_i32 = arith.constant 42 : i32
    %29 = vector.broadcast %c42_i32 : i32 to vector<32x196xi32>
    %30 = arith.cmpi eq, %8, %29 : vector<32x196xi32>
    %31 = arith.ori %25, %30 : vector<32x196xi1>
    %c55_i32 = arith.constant 55 : i32
    %32 = vector.broadcast %c55_i32 : i32 to vector<32x196xi32>
    %33 = arith.cmpi eq, %8, %32 : vector<32x196xi32>
    %34 = arith.ori %28, %33 : vector<32x196xi1>
    %c56_i32 = arith.constant 56 : i32
    %35 = vector.broadcast %c56_i32 : i32 to vector<32x196xi32>
    %36 = arith.cmpi eq, %8, %35 : vector<32x196xi32>
    %37 = arith.ori %31, %36 : vector<32x196xi1>
    %c69_i32 = arith.constant 69 : i32
    %38 = vector.broadcast %c69_i32 : i32 to vector<32x196xi32>
    %39 = arith.cmpi eq, %8, %38 : vector<32x196xi32>
    %40 = arith.ori %34, %39 : vector<32x196xi1>
    %c70_i32 = arith.constant 70 : i32
    %41 = vector.broadcast %c70_i32 : i32 to vector<32x196xi32>
    %42 = arith.cmpi eq, %8, %41 : vector<32x196xi32>
    %43 = arith.ori %37, %42 : vector<32x196xi1>
    %c83_i32 = arith.constant 83 : i32
    %44 = vector.broadcast %c83_i32 : i32 to vector<32x196xi32>
    %45 = arith.cmpi eq, %8, %44 : vector<32x196xi32>
    %46 = arith.ori %40, %45 : vector<32x196xi1>
    %c84_i32 = arith.constant 84 : i32
    %47 = vector.broadcast %c84_i32 : i32 to vector<32x196xi32>
    %48 = arith.cmpi eq, %8, %47 : vector<32x196xi32>
    %49 = arith.ori %43, %48 : vector<32x196xi1>
    %c97_i32 = arith.constant 97 : i32
    %50 = vector.broadcast %c97_i32 : i32 to vector<32x196xi32>
    %51 = arith.cmpi eq, %8, %50 : vector<32x196xi32>
    %52 = arith.ori %46, %51 : vector<32x196xi1>
    %c98_i32 = arith.constant 98 : i32
    %53 = vector.broadcast %c98_i32 : i32 to vector<32x196xi32>
    %54 = arith.cmpi eq, %8, %53 : vector<32x196xi32>
    %55 = arith.ori %49, %54 : vector<32x196xi1>
    %c111_i32 = arith.constant 111 : i32
    %56 = vector.broadcast %c111_i32 : i32 to vector<32x196xi32>
    %57 = arith.cmpi eq, %8, %56 : vector<32x196xi32>
    %58 = arith.ori %52, %57 : vector<32x196xi1>
    %c112_i32 = arith.constant 112 : i32
    %59 = vector.broadcast %c112_i32 : i32 to vector<32x196xi32>
    %60 = arith.cmpi eq, %8, %59 : vector<32x196xi32>
    %61 = arith.ori %55, %60 : vector<32x196xi1>
    %c125_i32 = arith.constant 125 : i32
    %62 = vector.broadcast %c125_i32 : i32 to vector<32x196xi32>
    %63 = arith.cmpi eq, %8, %62 : vector<32x196xi32>
    %64 = arith.ori %58, %63 : vector<32x196xi1>
    %c126_i32 = arith.constant 126 : i32
    %65 = vector.broadcast %c126_i32 : i32 to vector<32x196xi32>
    %66 = arith.cmpi eq, %8, %65 : vector<32x196xi32>
    %67 = arith.ori %61, %66 : vector<32x196xi1>
    %c139_i32 = arith.constant 139 : i32
    %68 = vector.broadcast %c139_i32 : i32 to vector<32x196xi32>
    %69 = arith.cmpi eq, %8, %68 : vector<32x196xi32>
    %70 = arith.ori %64, %69 : vector<32x196xi1>
    %c140_i32 = arith.constant 140 : i32
    %71 = vector.broadcast %c140_i32 : i32 to vector<32x196xi32>
    %72 = arith.cmpi eq, %8, %71 : vector<32x196xi32>
    %73 = arith.ori %67, %72 : vector<32x196xi1>
    %c153_i32 = arith.constant 153 : i32
    %74 = vector.broadcast %c153_i32 : i32 to vector<32x196xi32>
    %75 = arith.cmpi eq, %8, %74 : vector<32x196xi32>
    %76 = arith.ori %70, %75 : vector<32x196xi1>
    %c154_i32 = arith.constant 154 : i32
    %77 = vector.broadcast %c154_i32 : i32 to vector<32x196xi32>
    %78 = arith.cmpi eq, %8, %77 : vector<32x196xi32>
    %79 = arith.ori %73, %78 : vector<32x196xi1>
    %c167_i32 = arith.constant 167 : i32
    %80 = vector.broadcast %c167_i32 : i32 to vector<32x196xi32>
    %81 = arith.cmpi eq, %8, %80 : vector<32x196xi32>
    %82 = arith.ori %76, %81 : vector<32x196xi1>
    %c168_i32 = arith.constant 168 : i32
    %83 = vector.broadcast %c168_i32 : i32 to vector<32x196xi32>
    %84 = arith.cmpi eq, %8, %83 : vector<32x196xi32>
    %85 = arith.ori %79, %84 : vector<32x196xi1>
    %c181_i32 = arith.constant 181 : i32
    %86 = vector.broadcast %c181_i32 : i32 to vector<32x196xi32>
    %87 = arith.cmpi eq, %8, %86 : vector<32x196xi32>
    %88 = arith.ori %82, %87 : vector<32x196xi1>
    %c182_i32 = arith.constant 182 : i32
    %89 = vector.broadcast %c182_i32 : i32 to vector<32x196xi32>
    %90 = arith.cmpi eq, %8, %89 : vector<32x196xi32>
    %91 = arith.ori %85, %90 : vector<32x196xi1>
    %c195_i32 = arith.constant 195 : i32
    %92 = vector.broadcast %c195_i32 : i32 to vector<32x196xi32>
    %93 = arith.cmpi eq, %8, %92 : vector<32x196xi32>
    %94 = arith.ori %88, %93 : vector<32x196xi1>
    %cst_12 = arith.constant dense<true> : vector<32x196xi1>
    %95 = arith.xori %91, %cst_12 : vector<32x196xi1>
    %cst_13 = arith.constant dense<true> : vector<32x196xi1>
    %96 = arith.xori %94, %cst_13 : vector<32x196xi1>
    %cst_14 = arith.constant 0.000000e+00 : f32
    %97 = vector.broadcast %cst_14 : f32 to vector<32x196xf32>
    %c0_15 = arith.constant 0 : index
    %c113 = arith.constant 113 : index
    %98 = vector.load %arg4[%c0_15, %c113] : memref<288x384xf32, #tpu.memory_space<vmem>>, vector<32x196xf32>
    %cst_16 = arith.constant 0.000000e+00 : f32
    %99 = vector.broadcast %cst_16 : f32 to vector<32x196xf32>
    %100 = arith.select %95, %98, %99 : vector<32x196xi1>, vector<32x196xf32>
    %101 = arith.addf %97, %100 : vector<32x196xf32>
    %c32 = arith.constant 32 : index
    %c114 = arith.constant 114 : index
    %102 = vector.load %arg4[%c32, %c114] : memref<288x384xf32, #tpu.memory_space<vmem>>, vector<32x196xf32>
    %103 = arith.addf %101, %102 : vector<32x196xf32>
    %c64 = arith.constant 64 : index
    %c115 = arith.constant 115 : index
    %104 = vector.load %arg4[%c64, %c115] : memref<288x384xf32, #tpu.memory_space<vmem>>, vector<32x196xf32>
    %cst_17 = arith.constant 0.000000e+00 : f32
    %105 = vector.broadcast %cst_17 : f32 to vector<32x196xf32>
    %106 = arith.select %96, %104, %105 : vector<32x196xi1>, vector<32x196xf32>
    %107 = arith.addf %103, %106 : vector<32x196xf32>
    %c96 = arith.constant 96 : index
    %c127 = arith.constant 127 : index
    %108 = vector.load %arg4[%c96, %c127] : memref<288x384xf32, #tpu.memory_space<vmem>>, vector<32x196xf32>
    %cst_18 = arith.constant 0.000000e+00 : f32
    %109 = vector.broadcast %cst_18 : f32 to vector<32x196xf32>
    %110 = arith.select %95, %108, %109 : vector<32x196xi1>, vector<32x196xf32>
    %111 = arith.addf %107, %110 : vector<32x196xf32>
    %c128_19 = arith.constant 128 : index
    %c128_20 = arith.constant 128 : index
    %112 = vector.load %arg4[%c128_19, %c128_20] : memref<288x384xf32, #tpu.memory_space<vmem>>, vector<32x196xf32>
    %113 = arith.addf %111, %112 : vector<32x196xf32>
    %c160 = arith.constant 160 : index
    %c129 = arith.constant 129 : index
    %114 = vector.load %arg4[%c160, %c129] : memref<288x384xf32, #tpu.memory_space<vmem>>, vector<32x196xf32>
    %cst_21 = arith.constant 0.000000e+00 : f32
    %115 = vector.broadcast %cst_21 : f32 to vector<32x196xf32>
    %116 = arith.select %96, %114, %115 : vector<32x196xi1>, vector<32x196xf32>
    %117 = arith.addf %113, %116 : vector<32x196xf32>
    %c192 = arith.constant 192 : index
    %c141 = arith.constant 141 : index
    %118 = vector.load %arg4[%c192, %c141] : memref<288x384xf32, #tpu.memory_space<vmem>>, vector<32x196xf32>
    %cst_22 = arith.constant 0.000000e+00 : f32
    %119 = vector.broadcast %cst_22 : f32 to vector<32x196xf32>
    %120 = arith.select %95, %118, %119 : vector<32x196xi1>, vector<32x196xf32>
    %121 = arith.addf %117, %120 : vector<32x196xf32>
    %c224 = arith.constant 224 : index
    %c142 = arith.constant 142 : index
    %122 = vector.load %arg4[%c224, %c142] : memref<288x384xf32, #tpu.memory_space<vmem>>, vector<32x196xf32>
    %123 = arith.addf %121, %122 : vector<32x196xf32>
    %c256 = arith.constant 256 : index
    %c143 = arith.constant 143 : index
    %124 = vector.load %arg4[%c256, %c143] : memref<288x384xf32, #tpu.memory_space<vmem>>, vector<32x196xf32>
    %cst_23 = arith.constant 0.000000e+00 : f32
    %125 = vector.broadcast %cst_23 : f32 to vector<32x196xf32>
    %126 = arith.select %96, %124, %125 : vector<32x196xi1>, vector<32x196xf32>
    %127 = arith.addf %123, %126 : vector<32x196xf32>
    %c0_24 = arith.constant 0 : index
    %c0_25 = arith.constant 0 : index
    %128 = vector.load %arg2[%c0_24, %c0_25] : memref<32x196xf32, #tpu.memory_space<vmem>>, vector<32x196xf32>
    tpu.vector_store %arg2[%c0_24, %c0_25], %127 {strides = array<i32>} : memref<32x196xf32, #tpu.memory_space<vmem>>, vector<32x196xf32>,
    return
  }
}

</mosaic_0001>

<llo_original>
// kernel: tpu_custom_call.1
$region0: #{tpu_custom_call.1}
  #allocation0 [shape = 'u32[]', space=smem, size = 0x4, offset = 0x4, fixed_abs, tag = 'smem constant byte address 0x4 - core index']
  #allocation1 [shape = 'u32[72,128]{1,0:T(1,128)}', space=vmem, size = 0x9000, scoped, tag = 'internal scratch']
  #allocation2 [shape = 'f32[128,384]{1,0:T(8,128)}', space=vmem, size = 0x30000, scoped, tag = 'scratch operand']
  #allocation3 [shape = 'f32[288,384]{1,0:T(8,128)}', space=vmem, size = 0x6c000, scoped, tag = 'scratch operand']
  %s0 = inlined_call_operand.vmem [shape: f32[128,196], index: 0, kind: input, shape index: {}]
  %s1 = inlined_call_operand.vmem [shape: f32[288,128], index: 1, kind: input, shape index: {}]
  %s2 = inlined_call_operand.hbm [shape: f32[32,196], index: 2, kind: output, shape index: {}]
  %s3 = sld [smem:[#allocation0]]
  $region18: #{tpu_custom_call.1} parent=0
    _
  %s5 = ssub.s32 1, %s3
  %s6 = scalar_select 0, %s5, %s3
  $region1: #{tpu_custom_call.1} parent=0
    #allocation4 [shape = 'u8[32768]{0}', space=vmem, size = 0x8000, scoped, tag = 'output window, operand 0, single buffered']
    #allocation5 [shape = 's32[1]{0}', space=sflag, size = 0x4, scoped, tag = 'scoped memory for tpu_custom_call.1']
    %7 = vsyncpa [#allocation5], 0
    // Predicated region
    $region2: #{tpu_custom_call.1} parent=1 // pred_check
      _
    $region3: #{tpu_custom_call.1} parent=1 // pred_check_branch
      %9 = sbr.rel (0) target = $region5
    $region4: #{tpu_custom_call.1} parent=1 // pred_region
      _
    $region5: #{tpu_custom_call.1} parent=1 // pred_fallthru
      _
    // Predicated region
    $region6: #{tpu_custom_call.1} parent=1 // pred_check
      _
    $region7: #{tpu_custom_call.1} parent=1 // pred_check_branch
      %11 = sbr.rel (0) target = $region9
    $region8: #{tpu_custom_call.1} parent=1 // pred_region
      _
    $region9: #{tpu_custom_call.1} parent=1 // pred_fallthru
      _
    %12 = vst [vmem:[#allocation2] sm:$0xff] 0.0
    %13 = vst [vmem:[#allocation2 + $0x8] sm:$0xff] 0.0
    %14 = vst [vmem:[#allocation2 + $0x10] sm:$0xff] 0.0
    %15 = vst [vmem:[#allocation2 + $0x18] sm:$0xff] 0.0
    %16 = vst [vmem:[#allocation2 + $0x20] sm:$0xff] 0.0
    %17 = vst [vmem:[#allocation2 + $0x28] sm:$0xff] 0.0
    %18 = vst [vmem:[#allocation2 + $0x30] sm:$0xff] 0.0
    %19 = vst [vmem:[#allocation2 + $0x38] sm:$0xff] 0.0
    %20 = vst [vmem:[#allocation2 + $0x40] sm:$0xff] 0.0
    %21 = vst [vmem:[#allocation2 + $0x48] sm:$0xff] 0.0
    %22 = vst [vmem:[#allocation2 + $0x50] sm:$0xff] 0.0
    %23 = vst [vmem:[#allocation2 + $0x58] sm:$0xff] 0.0
    %24 = vst [vmem:[#allocation2 + $0x60] sm:$0xff] 0.0
    %25 = vst [vmem:[#allocation2 + $0x68] sm:$0xff] 0.0
    %26 = vst [vmem:[#allocation2 + $0x70] sm:$0xff] 0.0
    %27 = vst [vmem:[#allocation2 + $0x78] sm:$0xff] 0.0
    %28 = vst [vmem:[#allocation2 + $0x80] sm:$0xff] 0.0
    %29 = vst [vmem:[#allocation2 + $0x88] sm:$0xff] 0.0
    %30 = vst [vmem:[#allocation2 + $0x90] sm:$0xff] 0.0
    %31 = vst [vmem:[#allocation2 + $0x98] sm:$0xff] 0.0
    %32 = vst [vmem:[#allocation2 + $0xa0] sm:$0xff] 0.0
    %33 = vst [vmem:[#allocation2 + $0xa8] sm:$0xff] 0.0
    %34 = vst [vmem:[#allocation2 + $0xb0] sm:$0xff] 0.0
    %35 = vst [vmem:[#allocation2 + $0xb8] sm:$0xff] 0.0
    %36 = vst [vmem:[#allocation2 + $0xc0] sm:$0xff] 0.0
    %37 = vst [vmem:[#allocation2 + $0xc8] sm:$0xff] 0.0
    %38 = vst [vmem:[#allocation2 + $0xd0] sm:$0xff] 0.0
    %39 = vst [vmem:[#allocation2 + $0xd8] sm:$0xff] 0.0
    %40 = vst [vmem:[#allocation2 + $0xe0] sm:$0xff] 0.0
    %41 = vst [vmem:[#allocation2 + $0xe8] sm:$0xff] 0.0
    %42 = vst [vmem:[#allocation2 + $0xf0] sm:$0xff] 0.0
    %43 = vst [vmem:[#allocation2 + $0xf8] sm:$0xff] 0.0
    %44 = vst [vmem:[#allocation2 + $0x100] sm:$0xff] 0.0
    %45 = vst [vmem:[#allocation2 + $0x108] sm:$0xff] 0.0
    %46 = vst [vmem:[#allocation2 + $0x110] sm:$0xff] 0.0
    %47 = vst [vmem:[#allocation2 + $0x118] sm:$0xff] 0.0
    %48 = vst [vmem:[#allocation2 + $0x120] sm:$0xff] 0.0
    %49 = vst [vmem:[#allocation2 + $0x128] sm:$0xff] 0.0
    %50 = vst [vmem:[#allocation2 + $0x130] sm:$0xff] 0.0
    %51 = vst [vmem:[#allocation2 + $0x138] sm:$0xff] 0.0
    %52 = vst [vmem:[#allocation2 + $0x140] sm:$0xff] 0.0
    %53 = vst [vmem:[#allocation2 + $0x148] sm:$0xff] 0.0
    %54 = vst [vmem:[#allocation2 + $0x150] sm:$0xff] 0.0
    %55 = vst [vmem:[#allocation2 + $0x158] sm:$0xff] 0.0
    %56 = vst [vmem:[#allocation2 + $0x160] sm:$0xff] 0.0
    %57 = vst [vmem:[#allocation2 + $0x168] sm:$0xff] 0.0
    %58 = vst [vmem:[#allocation2 + $0x170] sm:$0xff] 0.0
    %59 = vst [vmem:[#allocation2 + $0x178] sm:$0xff] 0.0
    %v60 = vld [vmem:[%s0] sm:$0xff]
    %v61 = vld [vmem:[%s0 + $0x8] sm:$0xff]
    %v62 = vld [vmem:[%s0 + $0x10] sm:$0xff]
    %v63 = vld [vmem:[%s0 + $0x18] sm:$0xff]
    %v64 = vld [vmem:[%s0 + $0x20] sm:$0xff]
    %v65 = vld [vmem:[%s0 + $0x28] sm:$0xff]
    %v66 = vld [vmem:[%s0 + $0x30] sm:$0xff]
    %v67 = vld [vmem:[%s0 + $0x38] sm:$0xff]
    %v68 = vld [vmem:[%s0 + $0x40] sm:$0xff]
    %v69 = vld [vmem:[%s0 + $0x48] sm:$0xff]
    %v70 = vld [vmem:[%s0 + $0x50] sm:$0xff]
    %v71 = vld [vmem:[%s0 + $0x58] sm:$0xff]
    %v72 = vld [vmem:[%s0 + $0x60] sm:$0xff]
    %v73 = vld [vmem:[%s0 + $0x68] sm:$0xff]
    %v74 = vld [vmem:[%s0 + $0x70] sm:$0xff]
    %v75 = vld [vmem:[%s0 + $0x78] sm:$0xff]
    %v76 = vld [vmem:[%s0 + $0x80] sm:$0xff]
    %v77 = vld [vmem:[%s0 + $0x88] sm:$0xff]
    %v78 = vld [vmem:[%s0 + $0x90] sm:$0xff]
    %v79 = vld [vmem:[%s0 + $0x98] sm:$0xff]
    %v80 = vld [vmem:[%s0 + $0xa0] sm:$0xff]
    %v81 = vld [vmem:[%s0 + $0xa8] sm:$0xff]
    %v82 = vld [vmem:[%s0 + $0xb0] sm:$0xff]
    %v83 = vld [vmem:[%s0 + $0xb8] sm:$0xff]
    %v84 = vld [vmem:[%s0 + $0xc0] sm:$0xff]
    %v85 = vld [vmem:[%s0 + $0xc8] sm:$0xff]
    %v86 = vld [vmem:[%s0 + $0xd0] sm:$0xff]
    %v87 = vld [vmem:[%s0 + $0xd8] sm:$0xff]
    %v88 = vld [vmem:[%s0 + $0xe0] sm:$0xff]
    %v89 = vld [vmem:[%s0 + $0xe8] sm:$0xff]
    %v90 = vld [vmem:[%s0 + $0xf0] sm:$0xff]
    %v91 = vld [vmem:[%s0 + $0xf8] sm:$0xff]
    %92 = vst [vmem:[#allocation2 + $0x8] sm:$0xff] %v60
    %vm93 = vcmask 556032
    %94 = vst.msk [vmem:[#allocation2 + $0x10] sm:$0xff] %vm93, %v61
    %95 = vst [vmem:[#allocation2 + $0x20] sm:$0xff] %v62
    %96 = vst.msk [vmem:[#allocation2 + $0x28] sm:$0xff] %vm93, %v63
    %97 = vst [vmem:[#allocation2 + $0x38] sm:$0xff] %v64
    %98 = vst.msk [vmem:[#allocation2 + $0x40] sm:$0xff] %vm93, %v65
    %99 = vst [vmem:[#allocation2 + $0x50] sm:$0xff] %v66
    %100 = vst.msk [vmem:[#allocation2 + $0x58] sm:$0xff] %vm93, %v67
    %101 = vst [vmem:[#allocation2 + $0x68] sm:$0xff] %v68
    %102 = vst.msk [vmem:[#allocation2 + $0x70] sm:$0xff] %vm93, %v69
    %103 = vst [vmem:[#allocation2 + $0x80] sm:$0xff] %v70
    %104 = vst.msk [vmem:[#allocation2 + $0x88] sm:$0xff] %vm93, %v71
    %105 = vst [vmem:[#allocation2 + $0x98] sm:$0xff] %v72
    %106 = vst.msk [vmem:[#allocation2 + $0xa0] sm:$0xff] %vm93, %v73
    %107 = vst [vmem:[#allocation2 + $0xb0] sm:$0xff] %v74
    %108 = vst.msk [vmem:[#allocation2 + $0xb8] sm:$0xff] %vm93, %v75
    %109 = vst [vmem:[#allocation2 + $0xc8] sm:$0xff] %v76
    %110 = vst.msk [vmem:[#allocation2 + $0xd0] sm:$0xff] %vm93, %v77
    %111 = vst [vmem:[#allocation2 + $0xe0] sm:$0xff] %v78
    %112 = vst.msk [vmem:[#allocation2 + $0xe8] sm:$0xff] %vm93, %v79
    %113 = vst [vmem:[#allocation2 + $0xf8] sm:$0xff] %v80
    %114 = vst.msk [vmem:[#allocation2 + $0x100] sm:$0xff] %vm93, %v81
    %115 = vst [vmem:[#allocation2 + $0x110] sm:$0xff] %v82
    %116 = vst.msk [vmem:[#allocation2 + $0x118] sm:$0xff] %vm93, %v83
    %117 = vst [vmem:[#allocation2 + $0x128] sm:$0xff] %v84
    %118 = vst.msk [vmem:[#allocation2 + $0x130] sm:$0xff] %vm93, %v85
    %119 = vst [vmem:[#allocation2 + $0x140] sm:$0xff] %v86
    %120 = vst.msk [vmem:[#allocation2 + $0x148] sm:$0xff] %vm93, %v87
    %121 = vst [vmem:[#allocation2 + $0x158] sm:$0xff] %v88
    %122 = vst.msk [vmem:[#allocation2 + $0x160] sm:$0xff] %vm93, %v89
    %123 = vst [vmem:[#allocation2 + $0x170] sm:$0xff] %v90
    %124 = vst.msk [vmem:[#allocation2 + $0x178] sm:$0xff] %vm93, %v91
    %v125 = vld [vmem:[%s1] sm:$0xff]
    %v126 = vld [vmem:[%s1 + $0x8] sm:$0xff]
    %v127 = vld [vmem:[%s1 + $0x10] sm:$0xff]
    %v128 = vld [vmem:[%s1 + $0x18] sm:$0xff]
    %v129 = vld [vmem:[%s1 + $0x20] sm:$0xff]
    %v130 = vld [vmem:[%s1 + $0x28] sm:$0xff]
    %v131 = vld [vmem:[%s1 + $0x30] sm:$0xff]
    %v132 = vld [vmem:[%s1 + $0x38] sm:$0xff]
    %v133 = vld [vmem:[%s1 + $0x40] sm:$0xff]
    %v134 = vld [vmem:[%s1 + $0x48] sm:$0xff]
    %v135 = vld [vmem:[%s1 + $0x50] sm:$0xff]
    %v136 = vld [vmem:[%s1 + $0x58] sm:$0xff]
    %v137 = vld [vmem:[%s1 + $0x60] sm:$0xff]
    %v138 = vld [vmem:[%s1 + $0x68] sm:$0xff]
    %v139 = vld [vmem:[%s1 + $0x70] sm:$0xff]
    %v140 = vld [vmem:[%s1 + $0x78] sm:$0xff]
    %v141 = vld [vmem:[%s1 + $0x80] sm:$0xff]
    %v142 = vld [vmem:[%s1 + $0x88] sm:$0xff]
    %v143 = vld [vmem:[%s1 + $0x90] sm:$0xff]
    %v144 = vld [vmem:[%s1 + $0x98] sm:$0xff]
    %v145 = vld [vmem:[%s1 + $0xa0] sm:$0xff]
    %v146 = vld [vmem:[%s1 + $0xa8] sm:$0xff]
    %v147 = vld [vmem:[%s1 + $0xb0] sm:$0xff]
    %v148 = vld [vmem:[%s1 + $0xb8] sm:$0xff]
    %v149 = vld [vmem:[%s1 + $0xc0] sm:$0xff]
    %v150 = vld [vmem:[%s1 + $0xc8] sm:$0xff]
    %v151 = vld [vmem:[%s1 + $0xd0] sm:$0xff]
    %v152 = vld [vmem:[%s1 + $0xd8] sm:$0xff]
    %v153 = vld [vmem:[%s1 + $0xe0] sm:$0xff]
    %v154 = vld [vmem:[%s1 + $0xe8] sm:$0xff]
    %v155 = vld [vmem:[%s1 + $0xf0] sm:$0xff]
    %v156 = vld [vmem:[%s1 + $0xf8] sm:$0xff]
    %v157 = vld [vmem:[%s1 + $0x100] sm:$0xff]
    %v158 = vld [vmem:[%s1 + $0x108] sm:$0xff]
    %v159 = vld [vmem:[%s1 + $0x110] sm:$0xff]
    %v160 = vld [vmem:[%s1 + $0x118] sm:$0xff]
    %v161 = vld [vmem:[#allocation2] sm:$0xff]
    %v162 = vld [vmem:[#allocation2 + $0x8] sm:$0xff]
    %v163 = vld [vmem:[#allocation2 + $0x10] sm:$0xff]
    %v164 = vld [vmem:[#allocation2 + $0x18] sm:$0xff]
    %v165 = vld [vmem:[#allocation2 + $0x20] sm:$0xff]
    %v166 = vld [vmem:[#allocation2 + $0x28] sm:$0xff]
    %v167 = vld [vmem:[#allocation2 + $0x30] sm:$0xff]
    %v168 = vld [vmem:[#allocation2 + $0x38] sm:$0xff]
    %v169 = vld [vmem:[#allocation2 + $0x40] sm:$0xff]
    %v170 = vld [vmem:[#allocation2 + $0x48] sm:$0xff]
    %v171 = vld [vmem:[#allocation2 + $0x50] sm:$0xff]
    %v172 = vld [vmem:[#allocation2 + $0x58] sm:$0xff]
    %v173 = vld [vmem:[#allocation2 + $0x60] sm:$0xff]
    %v174 = vld [vmem:[#allocation2 + $0x68] sm:$0xff]
    %v175 = vld [vmem:[#allocation2 + $0x70] sm:$0xff]
    %v176 = vld [vmem:[#allocation2 + $0x78] sm:$0xff]
    %v177 = vld [vmem:[#allocation2 + $0x80] sm:$0xff]
    %v178 = vld [vmem:[#allocation2 + $0x88] sm:$0xff]
    %v179 = vld [vmem:[#allocation2 + $0x90] sm:$0xff]
    %v180 = vld [vmem:[#allocation2 + $0x98] sm:$0xff]
    %v181 = vld [vmem:[#allocation2 + $0xa0] sm:$0xff]
    %v182 = vld [vmem:[#allocation2 + $0xa8] sm:$0xff]
    %v183 = vld [vmem:[#allocation2 + $0xb0] sm:$0xff]
    %v184 = vld [vmem:[#allocation2 + $0xb8] sm:$0xff]
    %v185 = vld [vmem:[#allocation2 + $0xc0] sm:$0xff]
    %v186 = vld [vmem:[#allocation2 + $0xc8] sm:$0xff]
    %v187 = vld [vmem:[#allocation2 + $0xd0] sm:$0xff]
    %v188 = vld [vmem:[#allocation2 + $0xd8] sm:$0xff]
    %v189 = vld [vmem:[#allocation2 + $0xe0] sm:$0xff]
    %v190 = vld [vmem:[#allocation2 + $0xe8] sm:$0xff]
    %v191 = vld [vmem:[#allocation2 + $0xf0] sm:$0xff]
    %v192 = vld [vmem:[#allocation2 + $0xf8] sm:$0xff]
    %v193 = vld [vmem:[#allocation2 + $0x100] sm:$0xff]
    %v194 = vld [vmem:[#allocation2 + $0x108] sm:$0xff]
    %v195 = vld [vmem:[#allocation2 + $0x110] sm:$0xff]
    %v196 = vld [vmem:[#allocation2 + $0x118] sm:$0xff]
    %v197 = vld [vmem:[#allocation2 + $0x120] sm:$0xff]
    %v198 = vld [vmem:[#allocation2 + $0x128] sm:$0xff]
    %v199 = vld [vmem:[#allocation2 + $0x130] sm:$0xff]
    %v200 = vld [vmem:[#allocation2 + $0x138] sm:$0xff]
    %v201 = vld [vmem:[#allocation2 + $0x140] sm:$0xff]
    %v202 = vld [vmem:[#allocation2 + $0x148] sm:$0xff]
    %v203 = vld [vmem:[#allocation2 + $0x150] sm:$0xff]
    %v204 = vld [vmem:[#allocation2 + $0x158] sm:$0xff]
    %v205 = vld [vmem:[#allocation2 + $0x160] sm:$0xff]
    %v206 = vld [vmem:[#allocation2 + $0x168] sm:$0xff]
    %v207 = vld [vmem:[#allocation2 + $0x170] sm:$0xff]
    %v208 = vld [vmem:[#allocation2 + $0x178] sm:$0xff]
    %209 = vmatpush.msra.mxu0 %v206
    %210 = vmatpush.msra.mxu0 %v203
    %211 = vmatpush.msra.mxu0 %v200
    %212 = vmatpush.msra.mxu0 %v197
    %213 = vmatpush.msra.mxu0 %v194
    %214 = vmatpush.msra.mxu0 %v191
    %215 = vmatpush.msra.mxu0 %v188
    %216 = vmatpush.msra.mxu0 %v185
    %217 = vmatpush.msra.mxu0 %v182
    %218 = vmatpush.msra.mxu0 %v179
    %219 = vmatpush.msra.mxu0 %v176
    %220 = vmatpush.msra.mxu0 %v173
    %221 = vmatpush.msra.mxu0 %v170
    %222 = vmatpush.msra.mxu0 %v167
    %223 = vmatpush.msra.mxu0 %v164
    %224 = vmatpush.msra.mxu0 %v161
    %225 = vmatmul.f32.gmra.mxu0 %v125
    %v226 = vpop.f32.mrf.mxu0
    %v227 = vadd.f32 0.0, %v226
    %228 = vmatmul.f32.gmra.mxu0 %v126
    %v229 = vpop.f32.mrf.mxu0
    %v230 = vadd.f32 0.0, %v229
    %231 = vmatmul.f32.gmra.mxu0 %v127
    %v232 = vpop.f32.mrf.mxu0
    %v233 = vadd.f32 0.0, %v232
    %234 = vmatmul.f32.gmra.mxu0 %v128
    %v235 = vpop.f32.mrf.mxu0
    %v236 = vadd.f32 0.0, %v235
    %237 = vmatmul.f32.gmra.mxu0 %v129
    %v238 = vpop.f32.mrf.mxu0
    %v239 = vadd.f32 0.0, %v238
    %240 = vmatmul.f32.gmra.mxu0 %v130
    %v241 = vpop.f32.mrf.mxu0
    %v242 = vadd.f32 0.0, %v241
    %243 = vmatmul.f32.gmra.mxu0 %v131
    %v244 = vpop.f32.mrf.mxu0
    %v245 = vadd.f32 0.0, %v244
    %246 = vmatmul.f32.gmra.mxu0 %v132
    %v247 = vpop.f32.mrf.mxu0
    %v248 = vadd.f32 0.0, %v247
    %249 = vmatmul.f32.gmra.mxu0 %v133
    %v250 = vpop.f32.mrf.mxu0
    %v251 = vadd.f32 0.0, %v250
    %252 = vmatmul.f32.gmra.mxu0 %v134
    %v253 = vpop.f32.mrf.mxu0
    %v254 = vadd.f32 0.0, %v253
    %255 = vmatmul.f32.gmra.mxu0 %v135
    %v256 = vpop.f32.mrf.mxu0
    %v257 = vadd.f32 0.0, %v256
    %258 = vmatmul.f32.gmra.mxu0 %v136
    %v259 = vpop.f32.mrf.mxu0
    %v260 = vadd.f32 0.0, %v259
    %261 = vmatmul.f32.gmra.mxu0 %v137
    %v262 = vpop.f32.mrf.mxu0
    %v263 = vadd.f32 0.0, %v262
    %264 = vmatmul.f32.gmra.mxu0 %v138
    %v265 = vpop.f32.mrf.mxu0
    %v266 = vadd.f32 0.0, %v265
    %267 = vmatmul.f32.gmra.mxu0 %v139
    %v268 = vpop.f32.mrf.mxu0
    %v269 = vadd.f32 0.0, %v268
    %270 = vmatmul.f32.gmra.mxu0 %v140
    %v271 = vpop.f32.mrf.mxu0
    %v272 = vadd.f32 0.0, %v271
    %273 = vmatmul.f32.gmra.mxu0 %v141
    %v274 = vpop.f32.mrf.mxu0
    %v275 = vadd.f32 0.0, %v274
    %276 = vmatmul.f32.gmra.mxu0 %v142
    %v277 = vpop.f32.mrf.mxu0
    %v278 = vadd.f32 0.0, %v277
    %279 = vmatmul.f32.gmra.mxu0 %v143
    %v280 = vpop.f32.mrf.mxu0
    %v281 = vadd.f32 0.0, %v280
    %282 = vmatmul.f32.gmra.mxu0 %v144
    %v283 = vpop.f32.mrf.mxu0
    %v284 = vadd.f32 0.0, %v283
    %285 = vmatmul.f32.gmra.mxu0 %v145
    %v286 = vpop.f32.mrf.mxu0
    %v287 = vadd.f32 0.0, %v286
    %288 = vmatmul.f32.gmra.mxu0 %v146
    %v289 = vpop.f32.mrf.mxu0
    %v290 = vadd.f32 0.0, %v289
    %291 = vmatmul.f32.gmra.mxu0 %v147
    %v292 = vpop.f32.mrf.mxu0
    %v293 = vadd.f32 0.0, %v292
    %294 = vmatmul.f32.gmra.mxu0 %v148
    %v295 = vpop.f32.mrf.mxu0
    %v296 = vadd.f32 0.0, %v295
    %297 = vmatmul.f32.gmra.mxu0 %v149
    %v298 = vpop.f32.mrf.mxu0
    %v299 = vadd.f32 0.0, %v298
    %300 = vmatmul.f32.gmra.mxu0 %v150
    %v301 = vpop.f32.mrf.mxu0
    %v302 = vadd.f32 0.0, %v301
    %303 = vmatmul.f32.gmra.mxu0 %v151
    %v304 = vpop.f32.mrf.mxu0
    %v305 = vadd.f32 0.0, %v304
    %306 = vmatmul.f32.gmra.mxu0 %v152
    %v307 = vpop.f32.mrf.mxu0
    %v308 = vadd.f32 0.0, %v307
    %309 = vmatmul.f32.gmra.mxu0 %v153
    %v310 = vpop.f32.mrf.mxu0
    %v311 = vadd.f32 0.0, %v310
    %312 = vmatmul.f32.gmra.mxu0 %v154
    %v313 = vpop.f32.mrf.mxu0
    %v314 = vadd.f32 0.0, %v313
    %315 = vmatmul.f32.gmra.mxu0 %v155
    %v316 = vpop.f32.mrf.mxu0
    %v317 = vadd.f32 0.0, %v316
    %318 = vmatmul.f32.gmra.mxu0 %v156
    %v319 = vpop.f32.mrf.mxu0
    %v320 = vadd.f32 0.0, %v319
    %321 = vmatmul.f32.gmra.mxu0 %v157
    %v322 = vpop.f32.mrf.mxu0
    %v323 = vadd.f32 0.0, %v322
    %324 = vmatmul.f32.gmra.mxu0 %v158
    %v325 = vpop.f32.mrf.mxu0
    %v326 = vadd.f32 0.0, %v325
    %327 = vmatmul.f32.gmra.mxu0 %v159
    %v328 = vpop.f32.mrf.mxu0
    %v329 = vadd.f32 0.0, %v328
    %330 = vmatmul.f32.gmra.mxu0 %v160
    %v331 = vpop.f32.mrf.mxu0
    %v332 = vadd.f32 0.0, %v331
    %333 = vdwg.mxu0
    %334 = vmatpush.msra.mxu0 %v207
    %335 = vmatpush.msra.mxu0 %v204
    %336 = vmatpush.msra.mxu0 %v201
    %337 = vmatpush.msra.mxu0 %v198
    %338 = vmatpush.msra.mxu0 %v195
    %339 = vmatpush.msra.mxu0 %v192
    %340 = vmatpush.msra.mxu0 %v189
    %341 = vmatpush.msra.mxu0 %v186
    %342 = vmatpush.msra.mxu0 %v183
    %343 = vmatpush.msra.mxu0 %v180
    %344 = vmatpush.msra.mxu0 %v177
    %345 = vmatpush.msra.mxu0 %v174
    %346 = vmatpush.msra.mxu0 %v171
    %347 = vmatpush.msra.mxu0 %v168
    %348 = vmatpush.msra.mxu0 %v165
    %349 = vmatpush.msra.mxu0 %v162
    %350 = vmatmul.f32.gmra.mxu0 %v125
    %v351 = vpop.f32.mrf.mxu0
    %v352 = vadd.f32 0.0, %v351
    %353 = vmatmul.f32.gmra.mxu0 %v126
    %v354 = vpop.f32.mrf.mxu0
    %v355 = vadd.f32 0.0, %v354
    %356 = vmatmul.f32.gmra.mxu0 %v127
    %v357 = vpop.f32.mrf.mxu0
    %v358 = vadd.f32 0.0, %v357
    %359 = vmatmul.f32.gmra.mxu0 %v128
    %v360 = vpop.f32.mrf.mxu0
    %v361 = vadd.f32 0.0, %v360
    %362 = vmatmul.f32.gmra.mxu0 %v129
    %v363 = vpop.f32.mrf.mxu0
    %v364 = vadd.f32 0.0, %v363
    %365 = vmatmul.f32.gmra.mxu0 %v130
    %v366 = vpop.f32.mrf.mxu0
    %v367 = vadd.f32 0.0, %v366
    %368 = vmatmul.f32.gmra.mxu0 %v131
    %v369 = vpop.f32.mrf.mxu0
    %v370 = vadd.f32 0.0, %v369
    %371 = vmatmul.f32.gmra.mxu0 %v132
    %v372 = vpop.f32.mrf.mxu0
    %v373 = vadd.f32 0.0, %v372
    %374 = vmatmul.f32.gmra.mxu0 %v133
    %v375 = vpop.f32.mrf.mxu0
    %v376 = vadd.f32 0.0, %v375
    %377 = vmatmul.f32.gmra.mxu0 %v134
    %v378 = vpop.f32.mrf.mxu0
    %v379 = vadd.f32 0.0, %v378
    %380 = vmatmul.f32.gmra.mxu0 %v135
    %v381 = vpop.f32.mrf.mxu0
    %v382 = vadd.f32 0.0, %v381
    %383 = vmatmul.f32.gmra.mxu0 %v136
    %v384 = vpop.f32.mrf.mxu0
    %v385 = vadd.f32 0.0, %v384
    %386 = vmatmul.f32.gmra.mxu0 %v137
    %v387 = vpop.f32.mrf.mxu0
    %v388 = vadd.f32 0.0, %v387
    %389 = vmatmul.f32.gmra.mxu0 %v138
    %v390 = vpop.f32.mrf.mxu0
    %v391 = vadd.f32 0.0, %v390
    %392 = vmatmul.f32.gmra.mxu0 %v139
    %v393 = vpop.f32.mrf.mxu0
    %v394 = vadd.f32 0.0, %v393
    %395 = vmatmul.f32.gmra.mxu0 %v140
    %v396 = vpop.f32.mrf.mxu0
    %v397 = vadd.f32 0.0, %v396
    %398 = vmatmul.f32.gmra.mxu0 %v141
    %v399 = vpop.f32.mrf.mxu0
    %v400 = vadd.f32 0.0, %v399
    %401 = vmatmul.f32.gmra.mxu0 %v142
    %v402 = vpop.f32.mrf.mxu0
    %v403 = vadd.f32 0.0, %v402
    %404 = vmatmul.f32.gmra.mxu0 %v143
    %v405 = vpop.f32.mrf.mxu0
    %v406 = vadd.f32 0.0, %v405
    %407 = vmatmul.f32.gmra.mxu0 %v144
    %v408 = vpop.f32.mrf.mxu0
    %v409 = vadd.f32 0.0, %v408
    %410 = vmatmul.f32.gmra.mxu0 %v145
    %v411 = vpop.f32.mrf.mxu0
    %v412 = vadd.f32 0.0, %v411
    %413 = vmatmul.f32.gmra.mxu0 %v146
    %v414 = vpop.f32.mrf.mxu0
    %v415 = vadd.f32 0.0, %v414
    %416 = vmatmul.f32.gmra.mxu0 %v147
    %v417 = vpop.f32.mrf.mxu0
    %v418 = vadd.f32 0.0, %v417
    %419 = vmatmul.f32.gmra.mxu0 %v148
    %v420 = vpop.f32.mrf.mxu0
    %v421 = vadd.f32 0.0, %v420
    %422 = vmatmul.f32.gmra.mxu0 %v149
    %v423 = vpop.f32.mrf.mxu0
    %v424 = vadd.f32 0.0, %v423
    %425 = vmatmul.f32.gmra.mxu0 %v150
    %v426 = vpop.f32.mrf.mxu0
    %v427 = vadd.f32 0.0, %v426
    %428 = vmatmul.f32.gmra.mxu0 %v151
    %v429 = vpop.f32.mrf.mxu0
    %v430 = vadd.f32 0.0, %v429
    %431 = vmatmul.f32.gmra.mxu0 %v152
    %v432 = vpop.f32.mrf.mxu0
    %v433 = vadd.f32 0.0, %v432
    %434 = vmatmul.f32.gmra.mxu0 %v153
    %v435 = vpop.f32.mrf.mxu0
    %v436 = vadd.f32 0.0, %v435
    %437 = vmatmul.f32.gmra.mxu0 %v154
    %v438 = vpop.f32.mrf.mxu0
    %v439 = vadd.f32 0.0, %v438
    %440 = vmatmul.f32.gmra.mxu0 %v155
    %v441 = vpop.f32.mrf.mxu0
    %v442 = vadd.f32 0.0, %v441
    %443 = vmatmul.f32.gmra.mxu0 %v156
    %v444 = vpop.f32.mrf.mxu0
    %v445 = vadd.f32 0.0, %v444
    %446 = vmatmul.f32.gmra.mxu0 %v157
    %v447 = vpop.f32.mrf.mxu0
    %v448 = vadd.f32 0.0, %v447
    %449 = vmatmul.f32.gmra.mxu0 %v158
    %v450 = vpop.f32.mrf.mxu0
    %v451 = vadd.f32 0.0, %v450
    %452 = vmatmul.f32.gmra.mxu0 %v159
    %v453 = vpop.f32.mrf.mxu0
    %v454 = vadd.f32 0.0, %v453
    %455 = vmatmul.f32.gmra.mxu0 %v160
    %v456 = vpop.f32.mrf.mxu0
    %v457 = vadd.f32 0.0, %v456
    %458 = vdwg.mxu0
    %459 = vmatpush.msra.mxu0 %v208
    %460 = vmatpush.msra.mxu0 %v205
    %461 = vmatpush.msra.mxu0 %v202
    %462 = vmatpush.msra.mxu0 %v199
    %463 = vmatpush.msra.mxu0 %v196
    %464 = vmatpush.msra.mxu0 %v193
    %465 = vmatpush.msra.mxu0 %v190
    %466 = vmatpush.msra.mxu0 %v187
    %467 = vmatpush.msra.mxu0 %v184
    %468 = vmatpush.msra.mxu0 %v181
    %469 = vmatpush.msra.mxu0 %v178
    %470 = vmatpush.msra.mxu0 %v175
    %471 = vmatpush.msra.mxu0 %v172
    %472 = vmatpush.msra.mxu0 %v169
    %473 = vmatpush.msra.mxu0 %v166
    %474 = vmatpush.msra.mxu0 %v163
    %475 = vmatmul.f32.gmra.mxu0 %v125
    %v476 = vpop.f32.mrf.mxu0
    %v477 = vadd.f32 0.0, %v476
    %478 = vmatmul.f32.gmra.mxu0 %v126
    %v479 = vpop.f32.mrf.mxu0
    %v480 = vadd.f32 0.0, %v479
    %481 = vmatmul.f32.gmra.mxu0 %v127
    %v482 = vpop.f32.mrf.mxu0
    %v483 = vadd.f32 0.0, %v482
    %484 = vmatmul.f32.gmra.mxu0 %v128
    %v485 = vpop.f32.mrf.mxu0
    %v486 = vadd.f32 0.0, %v485
    %487 = vmatmul.f32.gmra.mxu0 %v129
    %v488 = vpop.f32.mrf.mxu0
    %v489 = vadd.f32 0.0, %v488
    %490 = vmatmul.f32.gmra.mxu0 %v130
    %v491 = vpop.f32.mrf.mxu0
    %v492 = vadd.f32 0.0, %v491
    %493 = vmatmul.f32.gmra.mxu0 %v131
    %v494 = vpop.f32.mrf.mxu0
    %v495 = vadd.f32 0.0, %v494
    %496 = vmatmul.f32.gmra.mxu0 %v132
    %v497 = vpop.f32.mrf.mxu0
    %v498 = vadd.f32 0.0, %v497
    %499 = vmatmul.f32.gmra.mxu0 %v133
    %v500 = vpop.f32.mrf.mxu0
    %v501 = vadd.f32 0.0, %v500
    %502 = vmatmul.f32.gmra.mxu0 %v134
    %v503 = vpop.f32.mrf.mxu0
    %v504 = vadd.f32 0.0, %v503
    %505 = vmatmul.f32.gmra.mxu0 %v135
    %v506 = vpop.f32.mrf.mxu0
    %v507 = vadd.f32 0.0, %v506
    %508 = vmatmul.f32.gmra.mxu0 %v136
    %v509 = vpop.f32.mrf.mxu0
    %v510 = vadd.f32 0.0, %v509
    %511 = vmatmul.f32.gmra.mxu0 %v137
    %v512 = vpop.f32.mrf.mxu0
    %v513 = vadd.f32 0.0, %v512
    %514 = vmatmul.f32.gmra.mxu0 %v138
    %v515 = vpop.f32.mrf.mxu0
    %v516 = vadd.f32 0.0, %v515
    %517 = vmatmul.f32.gmra.mxu0 %v139
    %v518 = vpop.f32.mrf.mxu0
    %v519 = vadd.f32 0.0, %v518
    %520 = vmatmul.f32.gmra.mxu0 %v140
    %v521 = vpop.f32.mrf.mxu0
    %v522 = vadd.f32 0.0, %v521
    %523 = vmatmul.f32.gmra.mxu0 %v141
    %v524 = vpop.f32.mrf.mxu0
    %v525 = vadd.f32 0.0, %v524
    %526 = vmatmul.f32.gmra.mxu0 %v142
    %v527 = vpop.f32.mrf.mxu0
    %v528 = vadd.f32 0.0, %v527
    %529 = vmatmul.f32.gmra.mxu0 %v143
    %v530 = vpop.f32.mrf.mxu0
    %v531 = vadd.f32 0.0, %v530
    %532 = vmatmul.f32.gmra.mxu0 %v144
    %v533 = vpop.f32.mrf.mxu0
    %v534 = vadd.f32 0.0, %v533
    %535 = vmatmul.f32.gmra.mxu0 %v145
    %v536 = vpop.f32.mrf.mxu0
    %v537 = vadd.f32 0.0, %v536
    %538 = vmatmul.f32.gmra.mxu0 %v146
    %v539 = vpop.f32.mrf.mxu0
    %v540 = vadd.f32 0.0, %v539
    %541 = vmatmul.f32.gmra.mxu0 %v147
    %v542 = vpop.f32.mrf.mxu0
    %v543 = vadd.f32 0.0, %v542
    %544 = vmatmul.f32.gmra.mxu0 %v148
    %v545 = vpop.f32.mrf.mxu0
    %v546 = vadd.f32 0.0, %v545
    %547 = vmatmul.f32.gmra.mxu0 %v149
    %v548 = vpop.f32.mrf.mxu0
    %v549 = vadd.f32 0.0, %v548
    %550 = vmatmul.f32.gmra.mxu0 %v150
    %v551 = vpop.f32.mrf.mxu0
    %v552 = vadd.f32 0.0, %v551
    %553 = vmatmul.f32.gmra.mxu0 %v151
    %v554 = vpop.f32.mrf.mxu0
    %v555 = vadd.f32 0.0, %v554
    %556 = vmatmul.f32.gmra.mxu0 %v152
    %v557 = vpop.f32.mrf.mxu0
    %v558 = vadd.f32 0.0, %v557
    %559 = vmatmul.f32.gmra.mxu0 %v153
    %v560 = vpop.f32.mrf.mxu0
    %v561 = vadd.f32 0.0, %v560
    %562 = vmatmul.f32.gmra.mxu0 %v154
    %v563 = vpop.f32.mrf.mxu0
    %v564 = vadd.f32 0.0, %v563
    %565 = vmatmul.f32.gmra.mxu0 %v155
    %v566 = vpop.f32.mrf.mxu0
    %v567 = vadd.f32 0.0, %v566
    %568 = vmatmul.f32.gmra.mxu0 %v156
    %v569 = vpop.f32.mrf.mxu0
    %v570 = vadd.f32 0.0, %v569
    %571 = vmatmul.f32.gmra.mxu0 %v157
    %v572 = vpop.f32.mrf.mxu0
    %v573 = vadd.f32 0.0, %v572
    %574 = vmatmul.f32.gmra.mxu0 %v158
    %v575 = vpop.f32.mrf.mxu0
    %v576 = vadd.f32 0.0, %v575
    %577 = vmatmul.f32.gmra.mxu0 %v159
    %v578 = vpop.f32.mrf.mxu0
    %v579 = vadd.f32 0.0, %v578
    %580 = vmatmul.f32.gmra.mxu0 %v160
    %v581 = vpop.f32.mrf.mxu0
    %v582 = vadd.f32 0.0, %v581
    %583 = vdwg.mxu0
    %584 = vst [vmem:[#allocation3] sm:$0xff] %v227
    %585 = vst [vmem:[#allocation3 + $0x8] sm:$0xff] %v352
    %586 = vst [vmem:[#allocation3 + $0x10] sm:$0xff] %v477
    %587 = vst [vmem:[#allocation3 + $0x18] sm:$0xff] %v230
    %588 = vst [vmem:[#allocation3 + $0x20] sm:$0xff] %v355
    %589 = vst [vmem:[#allocation3 + $0x28] sm:$0xff] %v480
    %590 = vst [vmem:[#allocation3 + $0x30] sm:$0xff] %v233
    %591 = vst [vmem:[#allocation3 + $0x38] sm:$0xff] %v358
    %592 = vst [vmem:[#allocation3 + $0x40] sm:$0xff] %v483
    %593 = vst [vmem:[#allocation3 + $0x48] sm:$0xff] %v236
    %594 = vst [vmem:[#allocation3 + $0x50] sm:$0xff] %v361
    %595 = vst [vmem:[#allocation3 + $0x58] sm:$0xff] %v486
    %596 = vst [vmem:[#allocation3 + $0x60] sm:$0xff] %v239
    %597 = vst [vmem:[#allocation3 + $0x68] sm:$0xff] %v364
    %598 = vst [vmem:[#allocation3 + $0x70] sm:$0xff] %v489
    %599 = vst [vmem:[#allocation3 + $0x78] sm:$0xff] %v242
    %600 = vst [vmem:[#allocation3 + $0x80] sm:$0xff] %v367
    %601 = vst [vmem:[#allocation3 + $0x88] sm:$0xff] %v492
    %602 = vst [vmem:[#allocation3 + $0x90] sm:$0xff] %v245
    %603 = vst [vmem:[#allocation3 + $0x98] sm:$0xff] %v370
    %604 = vst [vmem:[#allocation3 + $0xa0] sm:$0xff] %v495
    %605 = vst [vmem:[#allocation3 + $0xa8] sm:$0xff] %v248
    %606 = vst [vmem:[#allocation3 + $0xb0] sm:$0xff] %v373
    %607 = vst [vmem:[#allocation3 + $0xb8] sm:$0xff] %v498
    %608 = vst [vmem:[#allocation3 + $0xc0] sm:$0xff] %v251
    %609 = vst [vmem:[#allocation3 + $0xc8] sm:$0xff] %v376
    %610 = vst [vmem:[#allocation3 + $0xd0] sm:$0xff] %v501
    %611 = vst [vmem:[#allocation3 + $0xd8] sm:$0xff] %v254
    %612 = vst [vmem:[#allocation3 + $0xe0] sm:$0xff] %v379
    %613 = vst [vmem:[#allocation3 + $0xe8] sm:$0xff] %v504
    %614 = vst [vmem:[#allocation3 + $0xf0] sm:$0xff] %v257
    %615 = vst [vmem:[#allocation3 + $0xf8] sm:$0xff] %v382
    %616 = vst [vmem:[#allocation3 + $0x100] sm:$0xff] %v507
    %617 = vst [vmem:[#allocation3 + $0x108] sm:$0xff] %v260
    %618 = vst [vmem:[#allocation3 + $0x110] sm:$0xff] %v385
    %619 = vst [vmem:[#allocation3 + $0x118] sm:$0xff] %v510
    %620 = vst [vmem:[#allocation3 + $0x120] sm:$0xff] %v263
    %621 = vst [vmem:[#allocation3 + $0x128] sm:$0xff] %v388
    %622 = vst [vmem:[#allocation3 + $0x130] sm:$0xff] %v513
    %623 = vst [vmem:[#allocation3 + $0x138] sm:$0xff] %v266
    %624 = vst [vmem:[#allocation3 + $0x140] sm:$0xff] %v391
    %625 = vst [vmem:[#allocation3 + $0x148] sm:$0xff] %v516
    %626 = vst [vmem:[#allocation3 + $0x150] sm:$0xff] %v269
    %627 = vst [vmem:[#allocation3 + $0x158] sm:$0xff] %v394
    %628 = vst [vmem:[#allocation3 + $0x160] sm:$0xff] %v519
    %629 = vst [vmem:[#allocation3 + $0x168] sm:$0xff] %v272
    %630 = vst [vmem:[#allocation3 + $0x170] sm:$0xff] %v397
    %631 = vst [vmem:[#allocation3 + $0x178] sm:$0xff] %v522
    %632 = vst [vmem:[#allocation3 + $0x180] sm:$0xff] %v275
    %633 = vst [vmem:[#allocation3 + $0x188] sm:$0xff] %v400
    %634 = vst [vmem:[#allocation3 + $0x190] sm:$0xff] %v525
    %635 = vst [vmem:[#allocation3 + $0x198] sm:$0xff] %v278
    %636 = vst [vmem:[#allocation3 + $0x1a0] sm:$0xff] %v403
    %637 = vst [vmem:[#allocation3 + $0x1a8] sm:$0xff] %v528
    %638 = vst [vmem:[#allocation3 + $0x1b0] sm:$0xff] %v281
    %639 = vst [vmem:[#allocation3 + $0x1b8] sm:$0xff] %v406
    %640 = vst [vmem:[#allocation3 + $0x1c0] sm:$0xff] %v531
    %641 = vst [vmem:[#allocation3 + $0x1c8] sm:$0xff] %v284
    %642 = vst [vmem:[#allocation3 + $0x1d0] sm:$0xff] %v409
    %643 = vst [vmem:[#allocation3 + $0x1d8] sm:$0xff] %v534
    %644 = vst [vmem:[#allocation3 + $0x1e0] sm:$0xff] %v287
    %645 = vst [vmem:[#allocation3 + $0x1e8] sm:$0xff] %v412
    %646 = vst [vmem:[#allocation3 + $0x1f0] sm:$0xff] %v537
    %647 = vst [vmem:[#allocation3 + $0x1f8] sm:$0xff] %v290
    %648 = vst [vmem:[#allocation3 + $0x200] sm:$0xff] %v415
    %649 = vst [vmem:[#allocation3 + $0x208] sm:$0xff] %v540
    %650 = vst [vmem:[#allocation3 + $0x210] sm:$0xff] %v293
    %651 = vst [vmem:[#allocation3 + $0x218] sm:$0xff] %v418
    %652 = vst [vmem:[#allocation3 + $0x220] sm:$0xff] %v543
    %653 = vst [vmem:[#allocation3 + $0x228] sm:$0xff] %v296
    %654 = vst [vmem:[#allocation3 + $0x230] sm:$0xff] %v421
    %655 = vst [vmem:[#allocation3 + $0x238] sm:$0xff] %v546
    %656 = vst [vmem:[#allocation3 + $0x240] sm:$0xff] %v299
    %657 = vst [vmem:[#allocation3 + $0x248] sm:$0xff] %v424
    %658 = vst [vmem:[#allocation3 + $0x250] sm:$0xff] %v549
    %659 = vst [vmem:[#allocation3 + $0x258] sm:$0xff] %v302
    %660 = vst [vmem:[#allocation3 + $0x260] sm:$0xff] %v427
    %661 = vst [vmem:[#allocation3 + $0x268] sm:$0xff] %v552
    %662 = vst [vmem:[#allocation3 + $0x270] sm:$0xff] %v305
    %663 = vst [vmem:[#allocation3 + $0x278] sm:$0xff] %v430
    %664 = vst [vmem:[#allocation3 + $0x280] sm:$0xff] %v555
    %665 = vst [vmem:[#allocation3 + $0x288] sm:$0xff] %v308
    %666 = vst [vmem:[#allocation3 + $0x290] sm:$0xff] %v433
    %667 = vst [vmem:[#allocation3 + $0x298] sm:$0xff] %v558
    %668 = vst [vmem:[#allocation3 + $0x2a0] sm:$0xff] %v311
    %669 = vst [vmem:[#allocation3 + $0x2a8] sm:$0xff] %v436
    %670 = vst [vmem:[#allocation3 + $0x2b0] sm:$0xff] %v561
    %671 = vst [vmem:[#allocation3 + $0x2b8] sm:$0xff] %v314
    %672 = vst [vmem:[#allocation3 + $0x2c0] sm:$0xff] %v439
    %673 = vst [vmem:[#allocation3 + $0x2c8] sm:$0xff] %v564
    %674 = vst [vmem:[#allocation3 + $0x2d0] sm:$0xff] %v317
    %675 = vst [vmem:[#allocation3 + $0x2d8] sm:$0xff] %v442
    %676 = vst [vmem:[#allocation3 + $0x2e0] sm:$0xff] %v567
    %677 = vst [vmem:[#allocation3 + $0x2e8] sm:$0xff] %v320
    %678 = vst [vmem:[#allocation3 + $0x2f0] sm:$0xff] %v445
    %679 = vst [vmem:[#allocation3 + $0x2f8] sm:$0xff] %v570
    %680 = vst [vmem:[#allocation3 + $0x300] sm:$0xff] %v323
    %681 = vst [vmem:[#allocation3 + $0x308] sm:$0xff] %v448
    %682 = vst [vmem:[#allocation3 + $0x310] sm:$0xff] %v573
    %683 = vst [vmem:[#allocation3 + $0x318] sm:$0xff] %v326
    %684 = vst [vmem:[#allocation3 + $0x320] sm:$0xff] %v451
    %685 = vst [vmem:[#allocation3 + $0x328] sm:$0xff] %v576
    %686 = vst [vmem:[#allocation3 + $0x330] sm:$0xff] %v329
    %687 = vst [vmem:[#allocation3 + $0x338] sm:$0xff] %v454
    %688 = vst [vmem:[#allocation3 + $0x340] sm:$0xff] %v579
    %689 = vst [vmem:[#allocation3 + $0x348] sm:$0xff] %v332
    %690 = vst [vmem:[#allocation3 + $0x350] sm:$0xff] %v457
    %691 = vst [vmem:[#allocation3 + $0x358] sm:$0xff] %v582
    %v692 = vlaneseq
    %v693 = vand.u32 %v692, 127
    %v694 = vadd.s32 %v693, 128
    %vm695 = vcmp.eq.s32.totalorder %v693, 0
    %vm696 = vcmp.eq.s32.totalorder %v694, 0
    %vm697 = vcmp.eq.s32.totalorder %v693, 13
    %vm698 = vcmp.eq.s32.totalorder %v694, 13
    %vm699 = vcmp.eq.s32.totalorder %v693, 14
    %vm700 = vcmp.eq.s32.totalorder %v694, 14
    %vm701 = vmor %vm695, %vm699
    %vm702 = vmor %vm696, %vm700
    %vm703 = vcmp.eq.s32.totalorder %v693, 27
    %vm704 = vcmp.eq.s32.totalorder %v694, 27
    %vm705 = vmor %vm697, %vm703
    %vm706 = vmor %vm698, %vm704
    %vm707 = vcmp.eq.s32.totalorder %v693, 28
    %vm708 = vcmp.eq.s32.totalorder %v694, 28
    %vm709 = vmor %vm701, %vm707
    %vm710 = vmor %vm702, %vm708
    %vm711 = vcmp.eq.s32.totalorder %v693, 41
    %vm712 = vcmp.eq.s32.totalorder %v694, 41
    %vm713 = vmor %vm705, %vm711
    %vm714 = vmor %vm706, %vm712
    %vm715 = vcmp.eq.s32.totalorder %v693, 42
    %vm716 = vcmp.eq.s32.totalorder %v694, 42
    %vm717 = vmor %vm709, %vm715
    %vm718 = vmor %vm710, %vm716
    %vm719 = vcmp.eq.s32.totalorder %v693, 55
    %vm720 = vcmp.eq.s32.totalorder %v694, 55
    %vm721 = vmor %vm713, %vm719
    %vm722 = vmor %vm714, %vm720
    %vm723 = vcmp.eq.s32.totalorder %v693, 56
    %vm724 = vcmp.eq.s32.totalorder %v694, 56
    %vm725 = vmor %vm717, %vm723
    %vm726 = vmor %vm718, %vm724
    %vm727 = vcmp.eq.s32.totalorder %v693, 69
    %vm728 = vcmp.eq.s32.totalorder %v694, 69
    %vm729 = vmor %vm721, %vm727
    %vm730 = vmor %vm722, %vm728
    %vm731 = vcmp.eq.s32.totalorder %v693, 70
    %vm732 = vcmp.eq.s32.totalorder %v694, 70
    %vm733 = vmor %vm725, %vm731
    %vm734 = vmor %vm726, %vm732
    %vm735 = vcmp.eq.s32.totalorder %v693, 83
    %vm736 = vcmp.eq.s32.totalorder %v694, 83
    %vm737 = vmor %vm729, %vm735
    %vm738 = vmor %vm730, %vm736
    %vm739 = vcmp.eq.s32.totalorder %v693, 84
    %vm740 = vcmp.eq.s32.totalorder %v694, 84
    %vm741 = vmor %vm733, %vm739
    %vm742 = vmor %vm734, %vm740
    %vm743 = vcmp.eq.s32.totalorder %v693, 97
    %vm744 = vcmp.eq.s32.totalorder %v694, 97
    %vm745 = vmor %vm737, %vm743
    %vm746 = vmor %vm738, %vm744
    %vm747 = vcmp.eq.s32.totalorder %v693, 98
    %vm748 = vcmp.eq.s32.totalorder %v694, 98
    %vm749 = vmor %vm741, %vm747
    %vm750 = vmor %vm742, %vm748
    %vm751 = vcmp.eq.s32.totalorder %v693, 111
    %vm752 = vcmp.eq.s32.totalorder %v694, 111
    %vm753 = vmor %vm745, %vm751
    %vm754 = vmor %vm746, %vm752
    %vm755 = vcmp.eq.s32.totalorder %v693, 112
    %vm756 = vcmp.eq.s32.totalorder %v694, 112
    %vm757 = vmor %vm749, %vm755
    %vm758 = vmor %vm750, %vm756
    %vm759 = vcmp.eq.s32.totalorder %v693, 125
    %vm760 = vcmp.eq.s32.totalorder %v694, 125
    %vm761 = vmor %vm753, %vm759
    %vm762 = vmor %vm754, %vm760
    %vm763 = vcmp.eq.s32.totalorder %v693, 126
    %vm764 = vcmp.eq.s32.totalorder %v694, 126
    %vm765 = vmor %vm757, %vm763
    %vm766 = vmor %vm758, %vm764
    %vm767 = vcmp.eq.s32.totalorder %v693, 139
    %vm768 = vcmp.eq.s32.totalorder %v694, 139
    %vm769 = vmor %vm761, %vm767
    %vm770 = vmor %vm762, %vm768
    %vm771 = vcmp.eq.s32.totalorder %v693, 140
    %vm772 = vcmp.eq.s32.totalorder %v694, 140
    %vm773 = vmor %vm765, %vm771
    %vm774 = vmor %vm766, %vm772
    %vm775 = vcmp.eq.s32.totalorder %v693, 153
    %vm776 = vcmp.eq.s32.totalorder %v694, 153
    %vm777 = vmor %vm769, %vm775
    %vm778 = vmor %vm770, %vm776
    %vm779 = vcmp.eq.s32.totalorder %v693, 154
    %vm780 = vcmp.eq.s32.totalorder %v694, 154
    %vm781 = vmor %vm773, %vm779
    %vm782 = vmor %vm774, %vm780
    %vm783 = vcmp.eq.s32.totalorder %v693, 167
    %vm784 = vcmp.eq.s32.totalorder %v694, 167
    %vm785 = vmor %vm777, %vm783
    %vm786 = vmor %vm778, %vm784
    %vm787 = vcmp.eq.s32.totalorder %v693, 168
    %vm788 = vcmp.eq.s32.totalorder %v694, 168
    %vm789 = vmor %vm781, %vm787
    %vm790 = vmor %vm782, %vm788
    %vm791 = vcmp.eq.s32.totalorder %v693, 181
    %vm792 = vcmp.eq.s32.totalorder %v694, 181
    %vm793 = vmor %vm785, %vm791
    %vm794 = vmor %vm786, %vm792
    %vm795 = vcmp.eq.s32.totalorder %v693, 182
    %vm796 = vcmp.eq.s32.totalorder %v694, 182
    %vm797 = vmor %vm789, %vm795
    %vm798 = vmor %vm790, %vm796
    %vm799 = vcmp.eq.s32.totalorder %v693, 195
    %vm800 = vcmp.eq.s32.totalorder %v694, 195
    %vm801 = vmor %vm793, %vm799
    %vm802 = vmor %vm794, %vm800
    %vm803 = vmxor %vm797, 1
    %vm804 = vmxor %vm798, 1
    %vm805 = vmxor %vm801, 1
    %vm806 = vmxor %vm802, 1
    %v807 = vld [vmem:[#allocation3] sm:$0xff]
    %v808 = vld [vmem:[#allocation3 + $0x8] sm:$0xff]
    %v809 = vld [vmem:[#allocation3 + $0x10] sm:$0xff]
    %v810 = vld [vmem:[#allocation3 + $0x18] sm:$0xff]
    %v811 = vld [vmem:[#allocation3 + $0x20] sm:$0xff]
    %v812 = vld [vmem:[#allocation3 + $0x28] sm:$0xff]
    %v813 = vld [vmem:[#allocation3 + $0x30] sm:$0xff]
    %v814 = vld [vmem:[#allocation3 + $0x38] sm:$0xff]
    %v815 = vld [vmem:[#allocation3 + $0x40] sm:$0xff]
    %v816 = vld [vmem:[#allocation3 + $0x48] sm:$0xff]
    %v817 = vld [vmem:[#allocation3 + $0x50] sm:$0xff]
    %v818 = vld [vmem:[#allocation3 + $0x58] sm:$0xff]
    %831 = vrot.lane.b32.xlu0 %v807, 15
    %v832 = vpop.permute.xlu0 %831
    %833 = vrot.lane.b32.xlu0 %v808, 15
    %v834 = vpop.permute.xlu0 %833
    %835 = vrot.lane.b32.xlu0 %v809, 15
    %v836 = vpop.permute.xlu0 %835
    %837 = vrot.lane.b32.xlu0 %v810, 15
    %v838 = vpop.permute.xlu0 %837
    %839 = vrot.lane.b32.xlu0 %v811, 15
    %v840 = vpop.permute.xlu0 %839
    %841 = vrot.lane.b32.xlu0 %v812, 15
    %v842 = vpop.permute.xlu0 %841
    %843 = vrot.lane.b32.xlu0 %v813, 15
    %v844 = vpop.permute.xlu0 %843
    %845 = vrot.lane.b32.xlu0 %v814, 15
    %v846 = vpop.permute.xlu0 %845
    %847 = vrot.lane.b32.xlu0 %v815, 15
    %v848 = vpop.permute.xlu0 %847
    %849 = vrot.lane.b32.xlu0 %v816, 15
    %v850 = vpop.permute.xlu0 %849
    %851 = vrot.lane.b32.xlu0 %v817, 15
    %v852 = vpop.permute.xlu0 %851
    %853 = vrot.lane.b32.xlu0 %v818, 15
    %v854 = vpop.permute.xlu0 %853
    %vm855 = vcmask 121856
    %v856 = vsel %vm855, %v832, %v834
    %v857 = vsel %vm855, %v834, %v836
    %v858 = vsel %vm855, %v838, %v840
    %v859 = vsel %vm855, %v840, %v842
    %v860 = vsel %vm855, %v844, %v846
    %v861 = vsel %vm855, %v846, %v848
    %v862 = vsel %vm855, %v850, %v852
    %v863 = vsel %vm855, %v852, %v854
    %v872 = vsel %vm803, %v856, 0.0
    %v873 = vsel %vm804, %v857, 0.0
    %v874 = vsel %vm803, %v858, 0.0
    %v875 = vsel %vm804, %v859, 0.0
    %v876 = vsel %vm803, %v860, 0.0
    %v877 = vsel %vm804, %v861, 0.0
    %v878 = vsel %vm803, %v862, 0.0
    %v879 = vsel %vm804, %v863, 0.0
    %v880 = vadd.f32 %v872, 0.0
    %v881 = vadd.f32 %v873, 0.0
    %v882 = vadd.f32 %v874, 0.0
    %v883 = vadd.f32 %v875, 0.0
    %v884 = vadd.f32 %v876, 0.0
    %v885 = vadd.f32 %v877, 0.0
    %v886 = vadd.f32 %v878, 0.0
    %v887 = vadd.f32 %v879, 0.0
    %v888 = vld [vmem:[#allocation3 + $0x60] sm:$0xff]
    %v889 = vld [vmem:[#allocation3 + $0x68] sm:$0xff]
    %v890 = vld [vmem:[#allocation3 + $0x70] sm:$0xff]
    %v891 = vld [vmem:[#allocation3 + $0x78] sm:$0xff]
    %v892 = vld [vmem:[#allocation3 + $0x80] sm:$0xff]
    %v893 = vld [vmem:[#allocation3 + $0x88] sm:$0xff]
    %v894 = vld [vmem:[#allocation3 + $0x90] sm:$0xff]
    %v895 = vld [vmem:[#allocation3 + $0x98] sm:$0xff]
    %v896 = vld [vmem:[#allocation3 + $0xa0] sm:$0xff]
    %v897 = vld [vmem:[#allocation3 + $0xa8] sm:$0xff]
    %v898 = vld [vmem:[#allocation3 + $0xb0] sm:$0xff]
    %v899 = vld [vmem:[#allocation3 + $0xb8] sm:$0xff]
    %912 = vrot.lane.b32.xlu0 %v888, 14
    %v913 = vpop.permute.xlu0 %912
    %914 = vrot.lane.b32.xlu0 %v889, 14
    %v915 = vpop.permute.xlu0 %914
    %916 = vrot.lane.b32.xlu0 %v890, 14
    %v917 = vpop.permute.xlu0 %916
    %918 = vrot.lane.b32.xlu0 %v891, 14
    %v919 = vpop.permute.xlu0 %918
    %920 = vrot.lane.b32.xlu0 %v892, 14
    %v921 = vpop.permute.xlu0 %920
    %922 = vrot.lane.b32.xlu0 %v893, 14
    %v923 = vpop.permute.xlu0 %922
    %924 = vrot.lane.b32.xlu0 %v894, 14
    %v925 = vpop.permute.xlu0 %924
    %926 = vrot.lane.b32.xlu0 %v895, 14
    %v927 = vpop.permute.xlu0 %926
    %928 = vrot.lane.b32.xlu0 %v896, 14
    %v929 = vpop.permute.xlu0 %928
    %930 = vrot.lane.b32.xlu0 %v897, 14
    %v931 = vpop.permute.xlu0 %930
    %932 = vrot.lane.b32.xlu0 %v898, 14
    %v933 = vpop.permute.xlu0 %932
    %934 = vrot.lane.b32.xlu0 %v899, 14
    %v935 = vpop.permute.xlu0 %934
    %vm936 = vcmask 113664
    %v937 = vsel %vm936, %v913, %v915
    %v938 = vsel %vm936, %v915, %v917
    %v939 = vsel %vm936, %v919, %v921
    %v940 = vsel %vm936, %v921, %v923
    %v941 = vsel %vm936, %v925, %v927
    %v942 = vsel %vm936, %v927, %v929
    %v943 = vsel %vm936, %v931, %v933
    %v944 = vsel %vm936, %v933, %v935
    %v953 = vadd.f32 %v880, %v937
    %v954 = vadd.f32 %v881, %v938
    %v955 = vadd.f32 %v882, %v939
    %v956 = vadd.f32 %v883, %v940
    %v957 = vadd.f32 %v884, %v941
    %v958 = vadd.f32 %v885, %v942
    %v959 = vadd.f32 %v886, %v943
    %v960 = vadd.f32 %v887, %v944
    %v961 = vld [vmem:[#allocation3 + $0xc0] sm:$0xff]
    %v962 = vld [vmem:[#allocation3 + $0xc8] sm:$0xff]
    %v963 = vld [vmem:[#allocation3 + $0xd0] sm:$0xff]
    %v964 = vld [vmem:[#allocation3 + $0xd8] sm:$0xff]
    %v965 = vld [vmem:[#allocation3 + $0xe0] sm:$0xff]
    %v966 = vld [vmem:[#allocation3 + $0xe8] sm:$0xff]
    %v967 = vld [vmem:[#allocation3 + $0xf0] sm:$0xff]
    %v968 = vld [vmem:[#allocation3 + $0xf8] sm:$0xff]
    %v969 = vld [vmem:[#allocation3 + $0x100] sm:$0xff]
    %v970 = vld [vmem:[#allocation3 + $0x108] sm:$0xff]
    %v971 = vld [vmem:[#allocation3 + $0x110] sm:$0xff]
    %v972 = vld [vmem:[#allocation3 + $0x118] sm:$0xff]
    %985 = vrot.lane.b32.xlu0 %v961, 13
    %v986 = vpop.permute.xlu0 %985
    %987 = vrot.lane.b32.xlu0 %v962, 13
    %v988 = vpop.permute.xlu0 %987
    %989 = vrot.lane.b32.xlu0 %v963, 13
    %v990 = vpop.permute.xlu0 %989
    %991 = vrot.lane.b32.xlu0 %v964, 13
    %v992 = vpop.permute.xlu0 %991
    %993 = vrot.lane.b32.xlu0 %v965, 13
    %v994 = vpop.permute.xlu0 %993
    %995 = vrot.lane.b32.xlu0 %v966, 13
    %v996 = vpop.permute.xlu0 %995
    %997 = vrot.lane.b32.xlu0 %v967, 13
    %v998 = vpop.permute.xlu0 %997
    %999 = vrot.lane.b32.xlu0 %v968, 13
    %v1000 = vpop.permute.xlu0 %999
    %1001 = vrot.lane.b32.xlu0 %v969, 13
    %v1002 = vpop.permute.xlu0 %1001
    %1003 = vrot.lane.b32.xlu0 %v970, 13
    %v1004 = vpop.permute.xlu0 %1003
    %1005 = vrot.lane.b32.xlu0 %v971, 13
    %v1006 = vpop.permute.xlu0 %1005
    %1007 = vrot.lane.b32.xlu0 %v972, 13
    %v1008 = vpop.permute.xlu0 %1007
    %vm1009 = vcmask 105472
    %v1010 = vsel %vm1009, %v986, %v988
    %v1011 = vsel %vm1009, %v988, %v990
    %v1012 = vsel %vm1009, %v992, %v994
    %v1013 = vsel %vm1009, %v994, %v996
    %v1014 = vsel %vm1009, %v998, %v1000
    %v1015 = vsel %vm1009, %v1000, %v1002
    %v1016 = vsel %vm1009, %v1004, %v1006
    %v1017 = vsel %vm1009, %v1006, %v1008
    %v1026 = vsel %vm805, %v1010, 0.0
    %v1027 = vsel %vm806, %v1011, 0.0
    %v1028 = vsel %vm805, %v1012, 0.0
    %v1029 = vsel %vm806, %v1013, 0.0
    %v1030 = vsel %vm805, %v1014, 0.0
    %v1031 = vsel %vm806, %v1015, 0.0
    %v1032 = vsel %vm805, %v1016, 0.0
    %v1033 = vsel %vm806, %v1017, 0.0
    %v1034 = vadd.f32 %v953, %v1026
    %v1035 = vadd.f32 %v954, %v1027
    %v1036 = vadd.f32 %v955, %v1028
    %v1037 = vadd.f32 %v956, %v1029
    %v1038 = vadd.f32 %v957, %v1030
    %v1039 = vadd.f32 %v958, %v1031
    %v1040 = vadd.f32 %v959, %v1032
    %v1041 = vadd.f32 %v960, %v1033
    %v1042 = vld [vmem:[#allocation3 + $0x120] sm:$0xff]
    %v1043 = vld [vmem:[#allocation3 + $0x128] sm:$0xff]
    %v1044 = vld [vmem:[#allocation3 + $0x130] sm:$0xff]
    %v1045 = vld [vmem:[#allocation3 + $0x138] sm:$0xff]
    %v1046 = vld [vmem:[#allocation3 + $0x140] sm:$0xff]
    %v1047 = vld [vmem:[#allocation3 + $0x148] sm:$0xff]
    %v1048 = vld [vmem:[#allocation3 + $0x150] sm:$0xff]
    %v1049 = vld [vmem:[#allocation3 + $0x158] sm:$0xff]
    %v1050 = vld [vmem:[#allocation3 + $0x160] sm:$0xff]
    %v1051 = vld [vmem:[#allocation3 + $0x168] sm:$0xff]
    %v1052 = vld [vmem:[#allocation3 + $0x170] sm:$0xff]
    %v1053 = vld [vmem:[#allocation3 + $0x178] sm:$0xff]
    %1066 = vrot.lane.b32.xlu0 %v1042, 1
    %v1067 = vpop.permute.xlu0 %1066
    %1068 = vrot.lane.b32.xlu0 %v1043, 1
    %v1069 = vpop.permute.xlu0 %1068
    %1070 = vrot.lane.b32.xlu0 %v1044, 1
    %v1071 = vpop.permute.xlu0 %1070
    %1072 = vrot.lane.b32.xlu0 %v1045, 1
    %v1073 = vpop.permute.xlu0 %1072
    %1074 = vrot.lane.b32.xlu0 %v1046, 1
    %v1075 = vpop.permute.xlu0 %1074
    %1076 = vrot.lane.b32.xlu0 %v1047, 1
    %v1077 = vpop.permute.xlu0 %1076
    %1078 = vrot.lane.b32.xlu0 %v1048, 1
    %v1079 = vpop.permute.xlu0 %1078
    %1080 = vrot.lane.b32.xlu0 %v1049, 1
    %v1081 = vpop.permute.xlu0 %1080
    %1082 = vrot.lane.b32.xlu0 %v1050, 1
    %v1083 = vpop.permute.xlu0 %1082
    %1084 = vrot.lane.b32.xlu0 %v1051, 1
    %v1085 = vpop.permute.xlu0 %1084
    %1086 = vrot.lane.b32.xlu0 %v1052, 1
    %v1087 = vpop.permute.xlu0 %1086
    %1088 = vrot.lane.b32.xlu0 %v1053, 1
    %v1089 = vpop.permute.xlu0 %1088
    %vm1090 = vcmask 7168
    %v1091 = vsel %vm1090, %v1067, %v1069
    %v1092 = vsel %vm1090, %v1069, %v1071
    %v1093 = vsel %vm1090, %v1073, %v1075
    %v1094 = vsel %vm1090, %v1075, %v1077
    %v1095 = vsel %vm1090, %v1079, %v1081
    %v1096 = vsel %vm1090, %v1081, %v1083
    %v1097 = vsel %vm1090, %v1085, %v1087
    %v1098 = vsel %vm1090, %v1087, %v1089
    %v1107 = vsel %vm803, %v1091, 0.0
    %v1108 = vsel %vm804, %v1092, 0.0
    %v1109 = vsel %vm803, %v1093, 0.0
    %v1110 = vsel %vm804, %v1094, 0.0
    %v1111 = vsel %vm803, %v1095, 0.0
    %v1112 = vsel %vm804, %v1096, 0.0
    %v1113 = vsel %vm803, %v1097, 0.0
    %v1114 = vsel %vm804, %v1098, 0.0
    %v1115 = vadd.f32 %v1034, %v1107
    %v1116 = vadd.f32 %v1035, %v1108
    %v1117 = vadd.f32 %v1036, %v1109
    %v1118 = vadd.f32 %v1037, %v1110
    %v1119 = vadd.f32 %v1038, %v1111
    %v1120 = vadd.f32 %v1039, %v1112
    %v1121 = vadd.f32 %v1040, %v1113
    %v1122 = vadd.f32 %v1041, %v1114
    %v1123 = vld [vmem:[#allocation3 + $0x188] sm:$0xff]
    %v1124 = vld [vmem:[#allocation3 + $0x190] sm:$0xff]
    %v1125 = vld [vmem:[#allocation3 + $0x1a0] sm:$0xff]
    %v1126 = vld [vmem:[#allocation3 + $0x1a8] sm:$0xff]
    %v1127 = vld [vmem:[#allocation3 + $0x1b8] sm:$0xff]
    %v1128 = vld [vmem:[#allocation3 + $0x1c0] sm:$0xff]
    %v1129 = vld [vmem:[#allocation3 + $0x1d0] sm:$0xff]
    %v1130 = vld [vmem:[#allocation3 + $0x1d8] sm:$0xff]
    %v1131 = vadd.f32 %v1115, %v1123
    %v1132 = vadd.f32 %v1116, %v1124
    %v1133 = vadd.f32 %v1117, %v1125
    %v1134 = vadd.f32 %v1118, %v1126
    %v1135 = vadd.f32 %v1119, %v1127
    %v1136 = vadd.f32 %v1120, %v1128
    %v1137 = vadd.f32 %v1121, %v1129
    %v1138 = vadd.f32 %v1122, %v1130
    %v1139 = vld [vmem:[#allocation3 + $0x1e8] sm:$0xff]
    %v1140 = vld [vmem:[#allocation3 + $0x1f0] sm:$0xff]
    %v1141 = vld [vmem:[#allocation3 + $0x200] sm:$0xff]
    %v1142 = vld [vmem:[#allocation3 + $0x208] sm:$0xff]
    %v1143 = vld [vmem:[#allocation3 + $0x218] sm:$0xff]
    %v1144 = vld [vmem:[#allocation3 + $0x220] sm:$0xff]
    %v1145 = vld [vmem:[#allocation3 + $0x230] sm:$0xff]
    %v1146 = vld [vmem:[#allocation3 + $0x238] sm:$0xff]
    %1155 = vrot.lane.b32.xlu0 %v1139, 127
    %v1156 = vpop.permute.xlu0 %1155
    %1157 = vrot.lane.b32.xlu0 %v1140, 127
    %v1158 = vpop.permute.xlu0 %1157
    %1159 = vrot.lane.b32.xlu0 %v1141, 127
    %v1160 = vpop.permute.xlu0 %1159
    %1161 = vrot.lane.b32.xlu0 %v1142, 127
    %v1162 = vpop.permute.xlu0 %1161
    %1163 = vrot.lane.b32.xlu0 %v1143, 127
    %v1164 = vpop.permute.xlu0 %1163
    %1165 = vrot.lane.b32.xlu0 %v1144, 127
    %v1166 = vpop.permute.xlu0 %1165
    %1167 = vrot.lane.b32.xlu0 %v1145, 127
    %v1168 = vpop.permute.xlu0 %1167
    %1169 = vrot.lane.b32.xlu0 %v1146, 127
    %v1170 = vpop.permute.xlu0 %1169
    %vm1171 = vcmask 1039360
    %v1172 = vsel %vm1171, %v1156, %v1158
    %v1173 = vsel %vm1171, %v1160, %v1162
    %v1174 = vsel %vm1171, %v1164, %v1166
    %v1175 = vsel %vm1171, %v1168, %v1170
    %v1184 = vsel %vm805, %v1172, 0.0
    %v1185 = vsel %vm806, %v1158, 0.0
    %v1186 = vsel %vm805, %v1173, 0.0
    %v1187 = vsel %vm806, %v1162, 0.0
    %v1188 = vsel %vm805, %v1174, 0.0
    %v1189 = vsel %vm806, %v1166, 0.0
    %v1190 = vsel %vm805, %v1175, 0.0
    %v1191 = vsel %vm806, %v1170, 0.0
    %v1192 = vadd.f32 %v1131, %v1184
    %v1193 = vadd.f32 %v1132, %v1185
    %v1194 = vadd.f32 %v1133, %v1186
    %v1195 = vadd.f32 %v1134, %v1187
    %v1196 = vadd.f32 %v1135, %v1188
    %v1197 = vadd.f32 %v1136, %v1189
    %v1198 = vadd.f32 %v1137, %v1190
    %v1199 = vadd.f32 %v1138, %v1191
    %v1200 = vld [vmem:[#allocation3 + $0x248] sm:$0xff]
    %v1201 = vld [vmem:[#allocation3 + $0x250] sm:$0xff]
    %v1202 = vld [vmem:[#allocation3 + $0x260] sm:$0xff]
    %v1203 = vld [vmem:[#allocation3 + $0x268] sm:$0xff]
    %v1204 = vld [vmem:[#allocation3 + $0x278] sm:$0xff]
    %v1205 = vld [vmem:[#allocation3 + $0x280] sm:$0xff]
    %v1206 = vld [vmem:[#allocation3 + $0x290] sm:$0xff]
    %v1207 = vld [vmem:[#allocation3 + $0x298] sm:$0xff]
    %1216 = vrot.lane.b32.xlu0 %v1200, 115
    %v1217 = vpop.permute.xlu0 %1216
    %1218 = vrot.lane.b32.xlu0 %v1201, 115
    %v1219 = vpop.permute.xlu0 %1218
    %1220 = vrot.lane.b32.xlu0 %v1202, 115
    %v1221 = vpop.permute.xlu0 %1220
    %1222 = vrot.lane.b32.xlu0 %v1203, 115
    %v1223 = vpop.permute.xlu0 %1222
    %1224 = vrot.lane.b32.xlu0 %v1204, 115
    %v1225 = vpop.permute.xlu0 %1224
    %1226 = vrot.lane.b32.xlu0 %v1205, 115
    %v1227 = vpop.permute.xlu0 %1226
    %1228 = vrot.lane.b32.xlu0 %v1206, 115
    %v1229 = vpop.permute.xlu0 %1228
    %1230 = vrot.lane.b32.xlu0 %v1207, 115
    %v1231 = vpop.permute.xlu0 %1230
    %vm1232 = vcmask 941056
    %v1233 = vsel %vm1232, %v1217, %v1219
    %v1234 = vsel %vm1232, %v1221, %v1223
    %v1235 = vsel %vm1232, %v1225, %v1227
    %v1236 = vsel %vm1232, %v1229, %v1231
    %v1245 = vsel %vm803, %v1233, 0.0
    %v1246 = vsel %vm804, %v1219, 0.0
    %v1247 = vsel %vm803, %v1234, 0.0
    %v1248 = vsel %vm804, %v1223, 0.0
    %v1249 = vsel %vm803, %v1235, 0.0
    %v1250 = vsel %vm804, %v1227, 0.0
    %v1251 = vsel %vm803, %v1236, 0.0
    %v1252 = vsel %vm804, %v1231, 0.0
    %v1253 = vadd.f32 %v1192, %v1245
    %v1254 = vadd.f32 %v1193, %v1246
    %v1255 = vadd.f32 %v1194, %v1247
    %v1256 = vadd.f32 %v1195, %v1248
    %v1257 = vadd.f32 %v1196, %v1249
    %v1258 = vadd.f32 %v1197, %v1250
    %v1259 = vadd.f32 %v1198, %v1251
    %v1260 = vadd.f32 %v1199, %v1252
    %v1261 = vld [vmem:[#allocation3 + $0x2a8] sm:$0xff]
    %v1262 = vld [vmem:[#allocation3 + $0x2b0] sm:$0xff]
    %v1263 = vld [vmem:[#allocation3 + $0x2c0] sm:$0xff]
    %v1264 = vld [vmem:[#allocation3 + $0x2c8] sm:$0xff]
    %v1265 = vld [vmem:[#allocation3 + $0x2d8] sm:$0xff]
    %v1266 = vld [vmem:[#allocation3 + $0x2e0] sm:$0xff]
    %v1267 = vld [vmem:[#allocation3 + $0x2f0] sm:$0xff]
    %v1268 = vld [vmem:[#allocation3 + $0x2f8] sm:$0xff]
    %1277 = vrot.lane.b32.xlu0 %v1261, 114
    %v1278 = vpop.permute.xlu0 %1277
    %1279 = vrot.lane.b32.xlu0 %v1262, 114
    %v1280 = vpop.permute.xlu0 %1279
    %1281 = vrot.lane.b32.xlu0 %v1263, 114
    %v1282 = vpop.permute.xlu0 %1281
    %1283 = vrot.lane.b32.xlu0 %v1264, 114
    %v1284 = vpop.permute.xlu0 %1283
    %1285 = vrot.lane.b32.xlu0 %v1265, 114
    %v1286 = vpop.permute.xlu0 %1285
    %1287 = vrot.lane.b32.xlu0 %v1266, 114
    %v1288 = vpop.permute.xlu0 %1287
    %1289 = vrot.lane.b32.xlu0 %v1267, 114
    %v1290 = vpop.permute.xlu0 %1289
    %1291 = vrot.lane.b32.xlu0 %v1268, 114
    %v1292 = vpop.permute.xlu0 %1291
    %vm1293 = vcmask 932864
    %v1294 = vsel %vm1293, %v1278, %v1280
    %v1295 = vsel %vm1293, %v1282, %v1284
    %v1296 = vsel %vm1293, %v1286, %v1288
    %v1297 = vsel %vm1293, %v1290, %v1292
    %v1306 = vadd.f32 %v1253, %v1294
    %v1307 = vadd.f32 %v1254, %v1280
    %v1308 = vadd.f32 %v1255, %v1295
    %v1309 = vadd.f32 %v1256, %v1284
    %v1310 = vadd.f32 %v1257, %v1296
    %v1311 = vadd.f32 %v1258, %v1288
    %v1312 = vadd.f32 %v1259, %v1297
    %v1313 = vadd.f32 %v1260, %v1292
    %v1314 = vld [vmem:[#allocation3 + $0x308] sm:$0xff]
    %v1315 = vld [vmem:[#allocation3 + $0x310] sm:$0xff]
    %v1316 = vld [vmem:[#allocation3 + $0x320] sm:$0xff]
    %v1317 = vld [vmem:[#allocation3 + $0x328] sm:$0xff]
    %v1318 = vld [vmem:[#allocation3 + $0x338] sm:$0xff]
    %v1319 = vld [vmem:[#allocation3 + $0x340] sm:$0xff]
    %v1320 = vld [vmem:[#allocation3 + $0x350] sm:$0xff]
    %v1321 = vld [vmem:[#allocation3 + $0x358] sm:$0xff]
    %1330 = vrot.lane.b32.xlu0 %v1314, 113
    %v1331 = vpop.permute.xlu0 %1330
    %1332 = vrot.lane.b32.xlu0 %v1315, 113
    %v1333 = vpop.permute.xlu0 %1332
    %1334 = vrot.lane.b32.xlu0 %v1316, 113
    %v1335 = vpop.permute.xlu0 %1334
    %1336 = vrot.lane.b32.xlu0 %v1317, 113
    %v1337 = vpop.permute.xlu0 %1336
    %1338 = vrot.lane.b32.xlu0 %v1318, 113
    %v1339 = vpop.permute.xlu0 %1338
    %1340 = vrot.lane.b32.xlu0 %v1319, 113
    %v1341 = vpop.permute.xlu0 %1340
    %1342 = vrot.lane.b32.xlu0 %v1320, 113
    %v1343 = vpop.permute.xlu0 %1342
    %1344 = vrot.lane.b32.xlu0 %v1321, 113
    %v1345 = vpop.permute.xlu0 %1344
    %vm1346 = vcmask 924672
    %v1347 = vsel %vm1346, %v1331, %v1333
    %v1348 = vsel %vm1346, %v1335, %v1337
    %v1349 = vsel %vm1346, %v1339, %v1341
    %v1350 = vsel %vm1346, %v1343, %v1345
    %v1359 = vsel %vm805, %v1347, 0.0
    %v1360 = vsel %vm806, %v1333, 0.0
    %v1361 = vsel %vm805, %v1348, 0.0
    %v1362 = vsel %vm806, %v1337, 0.0
    %v1363 = vsel %vm805, %v1349, 0.0
    %v1364 = vsel %vm806, %v1341, 0.0
    %v1365 = vsel %vm805, %v1350, 0.0
    %v1366 = vsel %vm806, %v1345, 0.0
    %v1367 = vadd.f32 %v1306, %v1359
    %v1368 = vadd.f32 %v1307, %v1360
    %v1369 = vadd.f32 %v1308, %v1361
    %v1370 = vadd.f32 %v1309, %v1362
    %v1371 = vadd.f32 %v1310, %v1363
    %v1372 = vadd.f32 %v1311, %v1364
    %v1373 = vadd.f32 %v1312, %v1365
    %v1374 = vadd.f32 %v1313, %v1366
    %1375 = vst [vmem:[#allocation4] sm:$0xff] %v1367
    %1376 = vst.msk [vmem:[#allocation4 + $0x8] sm:$0xff] %vm93, %v1368
    %1377 = vst [vmem:[#allocation4 + $0x10] sm:$0xff] %v1369
    %1378 = vst.msk [vmem:[#allocation4 + $0x18] sm:$0xff] %vm93, %v1370
    %1379 = vst [vmem:[#allocation4 + $0x20] sm:$0xff] %v1371
    %1380 = vst.msk [vmem:[#allocation4 + $0x28] sm:$0xff] %vm93, %v1372
    %1381 = vst [vmem:[#allocation4 + $0x30] sm:$0xff] %v1373
    %1382 = vst.msk [vmem:[#allocation4 + $0x38] sm:$0xff] %vm93, %v1374
    // Predicated region
    $region10: #{tpu_custom_call.1} parent=1 // pred_check
      _
    $region11: #{tpu_custom_call.1} parent=1 // pred_check_branch
      %1384 = sbr.rel (0) target = $region13
    $region12: #{tpu_custom_call.1} parent=1 // pred_region
      %1386 = vsyncadd [#allocation5], 0
      %s1387 = sshll.u32 [#allocation4], 4
      %s1388 = int_to_ptr.vmem [resolvable:$true] %s1387
      %s1389 = sshll.u32 %s2, 4
      %s1390 = int_to_ptr.hbm [resolvable:$true] %s1389
      %1395 = dma.vmem_to_hbm [thread:$0]  %s1388, 1024, %s1390, [#allocation5], 256, 256, 16
    $region13: #{tpu_custom_call.1} parent=1 // pred_fallthru
      _
    // Predicated region
    $region14: #{tpu_custom_call.1} parent=1 // pred_check
      _
    $region15: #{tpu_custom_call.1} parent=1 // pred_check_branch
      %1397 = sbr.rel (0) target = $region17
    $region16: #{tpu_custom_call.1} parent=1 // pred_region
      %1399 = dma.done [#allocation5], 1024
    $region17: #{tpu_custom_call.1} parent=1 // pred_fallthru
      _
    %1400 = vsyncpa [#allocation5], 1

</llo_original>
